<compile_context>
chip_gen: v7x
topology: tpu7x:2x2x1
jax: 0.10.0
libtpu: 0.0.40
codegen_flags: <defaults>
</compile_context>

<pallas_src>
import functools

import jax
import jax.numpy as jnp
from jax.experimental import pallas as pl
from jax.experimental.pallas import tpu as pltpu


_BN_EPS = 1e-5


# ----------------------------------------------------------------------------
# Pallas kernel: CA forward for a block of `block_b` batch elements
# ----------------------------------------------------------------------------
def _ca_kernel(x_ref, pool_ref, e_ref, f_ref,
               w1_ref, b1_ref, w23_ref, b23_ref,
               o_ref, *, H, W, C, block_b):
    """x_ref / o_ref: (block_b, C, S) with S = H*W lane-dense.

    pool_ref: (S, H+W) -> v @ pool = [mean over W per h | mean over H per w]
    e_ref:    (H, S)   -> gate_h @ e replicates each h value across its W lanes
    f_ref:    (W, S)   -> gate_w @ f replicates the w pattern across all h
    """
    pool = pool_ref[...]            # (S, H+W)
    e = e_ref[...]                  # (H, S)
    f = f_ref[...]                  # (W, S)
    w1 = w1_ref[...]                # (T, C)   BN scale folded in
    b1 = b1_ref[...]                # (T, 1)   conv1 bias + BN shift folded
    w23 = w23_ref[...]              # (2C, T)  conv2 / conv3 stacked
    b23 = b23_ref[...]              # (2C, 1)

    for b in range(block_b):        # static unroll over the batch block
        x = x_ref[b]                                                    # (C, S)

        # conv1 reassociated with pooling: (w1 @ x) @ pool == w1 @ (x @ pool)
        t = jnp.dot(w1, x, preferred_element_type=jnp.float32)         # (T, S)
        xcat = jnp.dot(t, pool, preferred_element_type=jnp.float32)    # (T, H+W)
        y = jnp.maximum(xcat + b1, 0.0)                                 # BN bias + ReLU

        # conv2 / conv3 merged into one (2C, T) @ (T, H+W) matmul.
        z = jnp.dot(w23, y, preferred_element_type=jnp.float32) + b23   # (2C, H+W)
        ah = 1.0 / (1.0 + jnp.exp(-z[:C, :H]))                          # (C, H) sigmoid
        aw = 1.0 / (1.0 + jnp.exp(-z[C:, H:]))                          # (C, W) sigmoid

        # Broadcast the per-row / per-column gates back to lane-dense (C, S)
        # with constant replication matrices (stays on the MXU, no relayouts).
        ah_full = jnp.dot(ah, e, preferred_element_type=jnp.float32)    # (C, S)
        aw_full = jnp.dot(aw, f, preferred_element_type=jnp.float32)    # (C, S)

        # Matches torch: short * out_w * out_h
        o_ref[b] = (x * aw_full) * ah_full


# ----------------------------------------------------------------------------
# Wrapper
# ----------------------------------------------------------------------------
def _pick_block_b(B, target_steps=4):
    """Largest divisor of B that still leaves >= target_steps grid steps."""
    best = 1
    for cand in range(1, B + 1):
        if B % cand == 0 and B // cand >= target_steps:
            best = cand
    return best


def ca_forward(x_nchw, params, *, block_b=None):
    """x_nchw: (B, C, H, W) float32 -> (B, C, H, W)."""
    B, C, H, W = x_nchw.shape
    S = H * W
    w1 = params["w1"]
    T = w1.shape[0]
    Cout = params["w2"].shape[0]
    assert Cout == C, "short * out_w * out_h broadcast needs out_channels == in_channels"

    if block_b is None:
        block_b = _pick_block_b(B)
    assert B % block_b == 0

    x2 = x_nchw.reshape(B, C, S).astype(jnp.float32)                    # free reshape

    # Fold eval-mode BatchNorm (+ conv1 bias) into conv1's weight/bias.
    scale = params["gamma"] / jnp.sqrt(params["running_var"] + _BN_EPS)  # (T,)
    w1s = (w1 * scale[:, None]).astype(jnp.float32)                      # (T, C)
    b1f = (scale * (params["b1"] - params["running_mean"]) + params["beta"]
           ).reshape(T, 1).astype(jnp.float32)                           # (T, 1)

    # Merge conv2 / conv3 into one stacked weight / bias.
    w23 = jnp.concatenate([params["w2"], params["w3"]], axis=0)          # (2C, T)
    b23 = jnp.concatenate([params["b2"], params["b3"]], axis=0).reshape(2 * C, 1)

    # Constant pooling / broadcast operators (constant-folded under jit).
    s_idx = jnp.arange(S, dtype=jnp.int32)
    h_idx = s_idx // W
    w_idx = s_idx % W
    ph = (h_idx[:, None] == jnp.arange(H, dtype=jnp.int32)[None, :]
          ).astype(jnp.float32) / float(W)                               # (S, H)
    pw = (w_idx[:, None] == jnp.arange(W, dtype=jnp.int32)[None, :]
          ).astype(jnp.float32) / float(H)                               # (S, W)
    pool = jnp.concatenate([ph, pw], axis=1)                             # (S, H+W)
    e = (jnp.arange(H, dtype=jnp.int32)[:, None] == h_idx[None, :]).astype(jnp.float32)  # (H, S)
    f = (jnp.arange(W, dtype=jnp.int32)[:, None] == w_idx[None, :]).astype(jnp.float32)  # (W, S)

    def full2d(a):
        return pl.BlockSpec(a.shape, lambda b: (0, 0))

    out = pl.pallas_call(
        functools.partial(_ca_kernel, H=H, W=W, C=C, block_b=block_b),
        out_shape=jax.ShapeDtypeStruct((B, C, S), jnp.float32),
        grid=(B // block_b,),
        in_specs=[
            pl.BlockSpec((block_b, C, S), lambda b: (b, 0, 0)),          # x block
            full2d(pool), full2d(e), full2d(f),
            full2d(w1s), full2d(b1f), full2d(w23), full2d(b23),
        ],
        out_specs=pl.BlockSpec((block_b, C, S), lambda b: (b, 0, 0)),
        compiler_params=pltpu.CompilerParams(
            dimension_semantics=("parallel",),                           # batch over TCs
            vmem_limit_bytes=32 * 1024 * 1024,
        ),
    )(x2, pool, e, f, w1s, b1f, w23, b23)

    return out.reshape(B, C, H, W)


# ----------------------------------------------------------------------------
# Pure-JAX reference (mirrors the PyTorch forward, eval-mode BN)
# ----------------------------------------------------------------------------
def ca_reference(x, params):
    B, C, H, W = x.shape
    scale = params["gamma"] / jnp.sqrt(params["running_var"] + _BN_EPS)
    x_h = x.mean(axis=3)                                                 # (B, C, H)
    x_w = x.mean(axis=2)                                                 # (B, C, W)
    xcat = jnp.concatenate([x_h, x_w], axis=2)                           # (B, C, H+W)
    y0 = jnp.einsum("tc,bck->btk", params["w1"], xcat) + params["b1"][None, :, None]
    y = (y0 - params["running_mean"][None, :, None]) * scale[None, :, None] \
        + params["beta"][None, :, None]
    y = jnp.maximum(y, 0.0)
    yh, yw = y[:, :, :H], y[:, :, H:]
    ah = jax.nn.sigmoid(jnp.einsum("ot,bth->boh", params["w2"], yh)
                        + params["b2"][None, :, None])                   # (B, C, H)
    aw = jax.nn.sigmoid(jnp.einsum("ot,btw->bow", params["w3"], yw)
                        + params["b3"][None, :, None])                   # (B, C, W)
    return x * aw[:, :, None, :] * ah[:, :, :, None]


# ----------------------------------------------------------------------------
# Parameter initialization (deterministic, synthetic)
# ----------------------------------------------------------------------------
def _normal(key, shape, s=0.1):
    return s * jax.random.normal(key, shape, dtype=jnp.float32)


def init_ca(key, in_channels, out_channels, reduction=32):
    temp_c = max(8, in_channels // reduction)
    keys = jax.random.split(key, 10)
    return {
        "w1": _normal(keys[0], (temp_c, in_channels)),
        "b1": _normal(keys[1], (temp_c,)),
        "gamma": 1.0 + _normal(keys[2], (temp_c,)),
        "beta": _normal(keys[3], (temp_c,)),
        "running_mean": _normal(keys[4], (temp_c,)),
        "running_var": 1.0 + jnp.abs(_normal(keys[5], (temp_c,))),
        "w2": _normal(keys[6], (out_channels, temp_c)),
        "b2": _normal(keys[7], (out_channels,)),
        "w3": _normal(keys[8], (out_channels, temp_c)),
        "b3": _normal(keys[9], (out_channels,)),
    }


# ----------------------------------------------------------------------------
# Main
# ----------------------------------------------------------------------------
if __name__ == "__main__":
    B, C, H, W = 8, 64, 16, 16          # S = H*W = 256 (lane-aligned), T = 8

    key = jax.random.PRNGKey(0)
    k_x, k_p = jax.random.split(key)
    x = jax.random.normal(k_x, (B, C, H, W), dtype=jnp.float32)
    params = init_ca(k_p, C, C, reduction=32)

    fwd = jax.jit(lambda xx: ca_forward(xx, params))
    out = fwd(x)
    jax.block_until_ready(out)
    assert out.shape == (B, C, H, W)

    ref = ca_reference(x, params)
    if not bool(jnp.allclose(out, ref, rtol=1e-4, atol=1e-4)):
        raise AssertionError("Pallas CA output mismatch vs JAX reference")

    print("KERNEL_OK")
</pallas_src>

<mosaic_0001>
module attributes {stable_mosaic.version = 11 : i64} {
  func.func @_ca_kernel(%arg0: i32, %arg1: memref<2x64x256xf32, #tpu.memory_space<vmem>>, %arg2: memref<256x32xf32, #tpu.memory_space<vmem>>, %arg3: memref<16x256xf32, #tpu.memory_space<vmem>>, %arg4: memref<16x256xf32, #tpu.memory_space<vmem>>, %arg5: memref<8x64xf32, #tpu.memory_space<vmem>>, %arg6: memref<8x1xf32, #tpu.memory_space<vmem>>, %arg7: memref<128x8xf32, #tpu.memory_space<vmem>>, %arg8: memref<128x1xf32, #tpu.memory_space<vmem>>, %arg9: memref<2x64x256xf32, #tpu.memory_space<vmem>>) attributes {dimension_semantics = [#tpu.dimension_semantics<parallel>], iteration_bounds = array<i64: 4>, scalar_prefetch = 0 : i64, scratch_operands = 0 : i64, tpu.core_type = #tpu.core_type<tc>, window_params = [{transform_indices = @transform_0, window_bounds = array<i64: 2, 64, 256>}, {pipeline_mode = #tpu.pipeline_mode<synchronous>, transform_indices = @transform_1, window_bounds = array<i64: 256, 32>}, {pipeline_mode = #tpu.pipeline_mode<synchronous>, transform_indices = @transform_2, window_bounds = array<i64: 16, 256>}, {pipeline_mode = #tpu.pipeline_mode<synchronous>, transform_indices = @transform_3, window_bounds = array<i64: 16, 256>}, {pipeline_mode = #tpu.pipeline_mode<synchronous>, transform_indices = @transform_4, window_bounds = array<i64: 8, 64>}, {pipeline_mode = #tpu.pipeline_mode<synchronous>, transform_indices = @transform_5, window_bounds = array<i64: 8, 1>}, {pipeline_mode = #tpu.pipeline_mode<synchronous>, transform_indices = @transform_6, window_bounds = array<i64: 128, 8>}, {pipeline_mode = #tpu.pipeline_mode<synchronous>, transform_indices = @transform_7, window_bounds = array<i64: 128, 1>}, {transform_indices = @transform_8, window_bounds = array<i64: 2, 64, 256>}]} {
    %c0 = arith.constant 0 : index
    %c0_0 = arith.constant 0 : index
    %0 = vector.load %arg2[%c0, %c0_0] : memref<256x32xf32, #tpu.memory_space<vmem>>, vector<256x32xf32>
    %c0_1 = arith.constant 0 : index
    %c0_2 = arith.constant 0 : index
    %1 = vector.load %arg3[%c0_1, %c0_2] : memref<16x256xf32, #tpu.memory_space<vmem>>, vector<16x256xf32>
    %c0_3 = arith.constant 0 : index
    %c0_4 = arith.constant 0 : index
    %2 = vector.load %arg4[%c0_3, %c0_4] : memref<16x256xf32, #tpu.memory_space<vmem>>, vector<16x256xf32>
    %c0_5 = arith.constant 0 : index
    %c0_6 = arith.constant 0 : index
    %3 = vector.load %arg5[%c0_5, %c0_6] : memref<8x64xf32, #tpu.memory_space<vmem>>, vector<8x64xf32>
    %c0_7 = arith.constant 0 : index
    %c0_8 = arith.constant 0 : index
    %4 = vector.load %arg6[%c0_7, %c0_8] : memref<8x1xf32, #tpu.memory_space<vmem>>, vector<8x1xf32>
    %c0_9 = arith.constant 0 : index
    %c0_10 = arith.constant 0 : index
    %5 = vector.load %arg7[%c0_9, %c0_10] : memref<128x8xf32, #tpu.memory_space<vmem>>, vector<128x8xf32>
    %c0_11 = arith.constant 0 : index
    %c0_12 = arith.constant 0 : index
    %6 = vector.load %arg8[%c0_11, %c0_12] : memref<128x1xf32, #tpu.memory_space<vmem>>, vector<128x1xf32>
    %c0_13 = arith.constant 0 : index
    %c0_14 = arith.constant 0 : index
    %c0_15 = arith.constant 0 : index
    %7 = vector.load %arg1[%c0_13, %c0_14, %c0_15] : memref<2x64x256xf32, #tpu.memory_space<vmem>>, vector<1x64x256xf32>
    %8 = vector.shape_cast %7 : vector<1x64x256xf32> to vector<64x256xf32>
    %cst = arith.constant dense<0.000000e+00> : vector<8x256xf32>
    %9 = tpu.matmul %3, %8, %cst {dimension_numbers = #tpu.dot_dimension_numbers<[1], [0], [0], [1], [0, 0, 1, 1], [], []>} : vector<8x64xf32>, vector<64x256xf32>, vector<8x256xf32> -> vector<8x256xf32>
    %cst_16 = arith.constant dense<0.000000e+00> : vector<8x32xf32>
    %10 = tpu.matmul %9, %0, %cst_16 {dimension_numbers = #tpu.dot_dimension_numbers<[1], [0], [0], [1], [0, 0, 1, 1], [], []>} : vector<8x256xf32>, vector<256x32xf32>, vector<8x32xf32> -> vector<8x32xf32>
    %11 = vector.broadcast %4 : vector<8x1xf32> to vector<8x32xf32>
    %12 = arith.addf %10, %11 : vector<8x32xf32>
    %cst_17 = arith.constant 0.000000e+00 : f32
    %13 = vector.broadcast %cst_17 : f32 to vector<8x32xf32>
    %14 = arith.maximumf %12, %13 : vector<8x32xf32>
    %cst_18 = arith.constant dense<0.000000e+00> : vector<128x32xf32>
    %15 = tpu.matmul %5, %14, %cst_18 {dimension_numbers = #tpu.dot_dimension_numbers<[1], [0], [0], [1], [0, 0, 1, 1], [], []>} : vector<128x8xf32>, vector<8x32xf32>, vector<128x32xf32> -> vector<128x32xf32>
    %16 = vector.broadcast %6 : vector<128x1xf32> to vector<128x32xf32>
    %17 = arith.addf %15, %16 : vector<128x32xf32>
    %18 = vector.extract_strided_slice %17 {offsets = [0, 0], sizes = [64, 16], strides = [1, 1]} : vector<128x32xf32> to vector<64x16xf32>
    %cst_19 = arith.constant 0.000000e+00 : f32
    %19 = vector.broadcast %cst_19 : f32 to vector<64x16xf32>
    %20 = arith.subf %19, %18 : vector<64x16xf32>
    %21 = math.exp %20 : vector<64x16xf32>
    %cst_20 = arith.constant 1.000000e+00 : f32
    %22 = vector.broadcast %cst_20 : f32 to vector<64x16xf32>
    %23 = arith.addf %22, %21 : vector<64x16xf32>
    %cst_21 = arith.constant 1.000000e+00 : f32
    %24 = vector.broadcast %cst_21 : f32 to vector<64x16xf32>
    %25 = arith.divf %24, %23 : vector<64x16xf32>
    %26 = vector.extract_strided_slice %17 {offsets = [64, 16], sizes = [64, 16], strides = [1, 1]} : vector<128x32xf32> to vector<64x16xf32>
    %cst_22 = arith.constant 0.000000e+00 : f32
    %27 = vector.broadcast %cst_22 : f32 to vector<64x16xf32>
    %28 = arith.subf %27, %26 : vector<64x16xf32>
    %29 = math.exp %28 : vector<64x16xf32>
    %cst_23 = arith.constant 1.000000e+00 : f32
    %30 = vector.broadcast %cst_23 : f32 to vector<64x16xf32>
    %31 = arith.addf %30, %29 : vector<64x16xf32>
    %cst_24 = arith.constant 1.000000e+00 : f32
    %32 = vector.broadcast %cst_24 : f32 to vector<64x16xf32>
    %33 = arith.divf %32, %31 : vector<64x16xf32>
    %cst_25 = arith.constant dense<0.000000e+00> : vector<64x256xf32>
    %34 = tpu.matmul %25, %1, %cst_25 {dimension_numbers = #tpu.dot_dimension_numbers<[1], [0], [0], [1], [0, 0, 1, 1], [], []>} : vector<64x16xf32>, vector<16x256xf32>, vector<64x256xf32> -> vector<64x256xf32>
    %cst_26 = arith.constant dense<0.000000e+00> : vector<64x256xf32>
    %35 = tpu.matmul %33, %2, %cst_26 {dimension_numbers = #tpu.dot_dimension_numbers<[1], [0], [0], [1], [0, 0, 1, 1], [], []>} : vector<64x16xf32>, vector<16x256xf32>, vector<64x256xf32> -> vector<64x256xf32>
    %36 = arith.mulf %8, %35 : vector<64x256xf32>
    %37 = arith.mulf %36, %34 : vector<64x256xf32>
    %c0_27 = arith.constant 0 : index
    %c0_28 = arith.constant 0 : index
    %c0_29 = arith.constant 0 : index
    %38 = vector.load %arg9[%c0_27, %c0_28, %c0_29] : memref<2x64x256xf32, #tpu.memory_space<vmem>>, vector<1x64x256xf32>
    %39 = vector.shape_cast %38 : vector<1x64x256xf32> to vector<64x256xf32>
    %40 = vector.shape_cast %37 : vector<64x256xf32> to vector<1x64x256xf32>
    tpu.vector_store %arg9[%c0_27, %c0_28, %c0_29], %40 {strides = array<i32>} : memref<2x64x256xf32, #tpu.memory_space<vmem>>, vector<1x64x256xf32>,
    %c1 = arith.constant 1 : index
    %c0_30 = arith.constant 0 : index
    %c0_31 = arith.constant 0 : index
    %41 = vector.load %arg1[%c1, %c0_30, %c0_31] : memref<2x64x256xf32, #tpu.memory_space<vmem>>, vector<1x64x256xf32>
    %42 = vector.shape_cast %41 : vector<1x64x256xf32> to vector<64x256xf32>
    %cst_32 = arith.constant dense<0.000000e+00> : vector<8x256xf32>
    %43 = tpu.matmul %3, %42, %cst_32 {dimension_numbers = #tpu.dot_dimension_numbers<[1], [0], [0], [1], [0, 0, 1, 1], [], []>} : vector<8x64xf32>, vector<64x256xf32>, vector<8x256xf32> -> vector<8x256xf32>
    %cst_33 = arith.constant dense<0.000000e+00> : vector<8x32xf32>
    %44 = tpu.matmul %43, %0, %cst_33 {dimension_numbers = #tpu.dot_dimension_numbers<[1], [0], [0], [1], [0, 0, 1, 1], [], []>} : vector<8x256xf32>, vector<256x32xf32>, vector<8x32xf32> -> vector<8x32xf32>
    %45 = vector.broadcast %4 : vector<8x1xf32> to vector<8x32xf32>
    %46 = arith.addf %44, %45 : vector<8x32xf32>
    %cst_34 = arith.constant 0.000000e+00 : f32
    %47 = vector.broadcast %cst_34 : f32 to vector<8x32xf32>
    %48 = arith.maximumf %46, %47 : vector<8x32xf32>
    %cst_35 = arith.constant dense<0.000000e+00> : vector<128x32xf32>
    %49 = tpu.matmul %5, %48, %cst_35 {dimension_numbers = #tpu.dot_dimension_numbers<[1], [0], [0], [1], [0, 0, 1, 1], [], []>} : vector<128x8xf32>, vector<8x32xf32>, vector<128x32xf32> -> vector<128x32xf32>
    %50 = vector.broadcast %6 : vector<128x1xf32> to vector<128x32xf32>
    %51 = arith.addf %49, %50 : vector<128x32xf32>
    %52 = vector.extract_strided_slice %51 {offsets = [0, 0], sizes = [64, 16], strides = [1, 1]} : vector<128x32xf32> to vector<64x16xf32>
    %cst_36 = arith.constant 0.000000e+00 : f32
    %53 = vector.broadcast %cst_36 : f32 to vector<64x16xf32>
    %54 = arith.subf %53, %52 : vector<64x16xf32>
    %55 = math.exp %54 : vector<64x16xf32>
    %cst_37 = arith.constant 1.000000e+00 : f32
    %56 = vector.broadcast %cst_37 : f32 to vector<64x16xf32>
    %57 = arith.addf %56, %55 : vector<64x16xf32>
    %cst_38 = arith.constant 1.000000e+00 : f32
    %58 = vector.broadcast %cst_38 : f32 to vector<64x16xf32>
    %59 = arith.divf %58, %57 : vector<64x16xf32>
    %60 = vector.extract_strided_slice %51 {offsets = [64, 16], sizes = [64, 16], strides = [1, 1]} : vector<128x32xf32> to vector<64x16xf32>
    %cst_39 = arith.constant 0.000000e+00 : f32
    %61 = vector.broadcast %cst_39 : f32 to vector<64x16xf32>
    %62 = arith.subf %61, %60 : vector<64x16xf32>
    %63 = math.exp %62 : vector<64x16xf32>
    %cst_40 = arith.constant 1.000000e+00 : f32
    %64 = vector.broadcast %cst_40 : f32 to vector<64x16xf32>
    %65 = arith.addf %64, %63 : vector<64x16xf32>
    %cst_41 = arith.constant 1.000000e+00 : f32
    %66 = vector.broadcast %cst_41 : f32 to vector<64x16xf32>
    %67 = arith.divf %66, %65 : vector<64x16xf32>
    %cst_42 = arith.constant dense<0.000000e+00> : vector<64x256xf32>
    %68 = tpu.matmul %59, %1, %cst_42 {dimension_numbers = #tpu.dot_dimension_numbers<[1], [0], [0], [1], [0, 0, 1, 1], [], []>} : vector<64x16xf32>, vector<16x256xf32>, vector<64x256xf32> -> vector<64x256xf32>
    %cst_43 = arith.constant dense<0.000000e+00> : vector<64x256xf32>
    %69 = tpu.matmul %67, %2, %cst_43 {dimension_numbers = #tpu.dot_dimension_numbers<[1], [0], [0], [1], [0, 0, 1, 1], [], []>} : vector<64x16xf32>, vector<16x256xf32>, vector<64x256xf32> -> vector<64x256xf32>
    %70 = arith.mulf %42, %69 : vector<64x256xf32>
    %71 = arith.mulf %70, %68 : vector<64x256xf32>
    %c1_44 = arith.constant 1 : index
    %c0_45 = arith.constant 0 : index
    %c0_46 = arith.constant 0 : index
    %72 = vector.load %arg9[%c1_44, %c0_45, %c0_46] : memref<2x64x256xf32, #tpu.memory_space<vmem>>, vector<1x64x256xf32>
    %73 = vector.shape_cast %72 : vector<1x64x256xf32> to vector<64x256xf32>
    %74 = vector.shape_cast %71 : vector<64x256xf32> to vector<1x64x256xf32>
    tpu.vector_store %arg9[%c1_44, %c0_45, %c0_46], %74 {strides = array<i32>} : memref<2x64x256xf32, #tpu.memory_space<vmem>>, vector<1x64x256xf32>,
    return
  }
  func.func @transform_0(%arg0: i32) -> (i32, i32, i32) {
    %c0_i32 = arith.constant 0 : i32
    %c0_i32_0 = arith.constant 0 : i32
    %c0_i32_1 = arith.constant 0 : i32
    return %arg0, %c0_i32, %c0_i32_0 : i32, i32, i32
  }
  func.func @transform_1(%arg0: i32) -> (i32, i32) {
    %c0_i32 = arith.constant 0 : i32
    %c0_i32_0 = arith.constant 0 : i32
    %c0_i32_1 = arith.constant 0 : i32
    return %c0_i32, %c0_i32_0 : i32, i32
  }
  func.func @transform_2(%arg0: i32) -> (i32, i32) {
    %c0_i32 = arith.constant 0 : i32
    %c0_i32_0 = arith.constant 0 : i32
    %c0_i32_1 = arith.constant 0 : i32
    return %c0_i32, %c0_i32_0 : i32, i32
  }
  func.func @transform_3(%arg0: i32) -> (i32, i32) {
    %c0_i32 = arith.constant 0 : i32
    %c0_i32_0 = arith.constant 0 : i32
    %c0_i32_1 = arith.constant 0 : i32
    return %c0_i32, %c0_i32_0 : i32, i32
  }
  func.func @transform_4(%arg0: i32) -> (i32, i32) {
    %c0_i32 = arith.constant 0 : i32
    %c0_i32_0 = arith.constant 0 : i32
    %c0_i32_1 = arith.constant 0 : i32
    return %c0_i32, %c0_i32_0 : i32, i32
  }
  func.func @transform_5(%arg0: i32) -> (i32, i32) {
    %c0_i32 = arith.constant 0 : i32
    %c0_i32_0 = arith.constant 0 : i32
    %c0_i32_1 = arith.constant 0 : i32
    return %c0_i32, %c0_i32_0 : i32, i32
  }
  func.func @transform_6(%arg0: i32) -> (i32, i32) {
    %c0_i32 = arith.constant 0 : i32
    %c0_i32_0 = arith.constant 0 : i32
    %c0_i32_1 = arith.constant 0 : i32
    return %c0_i32, %c0_i32_0 : i32, i32
  }
  func.func @transform_7(%arg0: i32) -> (i32, i32) {
    %c0_i32 = arith.constant 0 : i32
    %c0_i32_0 = arith.constant 0 : i32
    %c0_i32_1 = arith.constant 0 : i32
    return %c0_i32, %c0_i32_0 : i32, i32
  }
  func.func @transform_8(%arg0: i32) -> (i32, i32, i32) {
    %c0_i32 = arith.constant 0 : i32
    %c0_i32_0 = arith.constant 0 : i32
    %c0_i32_1 = arith.constant 0 : i32
    return %arg0, %c0_i32, %c0_i32_0 : i32, i32, i32
  }
}

</mosaic_0001>

<llo_original>
// kernel: _lambda_.1
$region0: #{_lambda_.1}
  #allocation0 [shape = 'u32[]', space=smem, size = 0x4, offset = 0x4, fixed_abs, tag = 'smem constant byte address 0x4 - core index']
  #allocation1 [shape = 'u32[144,128]{1,0:T(1,128)}', space=vmem, size = 0x12000, scoped, tag = 'internal scratch']
  %s0 = inlined_call_operand.vmem [shape: f32[8,64,256], index: 0, kind: input, shape index: {}]
  %s1 = inlined_call_operand.vmem [shape: f32[256,32], index: 1, kind: input, shape index: {}]
  %s2 = inlined_call_operand.vmem [shape: f32[16,256], index: 2, kind: input, shape index: {}]
  %s3 = inlined_call_operand.vmem [shape: f32[16,256], index: 3, kind: input, shape index: {}]
  %s4 = inlined_call_operand.vmem [shape: f32[8,64], index: 4, kind: input, shape index: {}]
  %s5 = inlined_call_operand.vmem [shape: f32[8,1], index: 5, kind: input, shape index: {}]
  %s6 = inlined_call_operand.vmem [shape: f32[128,8], index: 6, kind: input, shape index: {}]
  %s7 = inlined_call_operand.vmem [shape: f32[128,1], index: 7, kind: input, shape index: {}]
  %s8 = inlined_call_operand.vmem [shape: f32[8,64,256], index: 8, kind: output, shape index: {}]
  %s9 = sld [smem:[#allocation0]]
  $region65: #{_lambda_.1} parent=0
    _
  %s11 = ssub.s32 1, %s9
  %s12 = scalar_select 0, %s11, %s9
  loop: start=0, step=1, limit=6
  $region2: #{_lambda_.1} parent=0 // loop_pre_header
    _
  $region3: #{_lambda_.1} parent=0 // loop_header
    %s14 = sphi 0, %s18
    %p15 = scmp.ge.s32.totalorder %s14, 6
    %s24 = sphi 0, %s26
    %s27 = sphi 0, %s24
    %s28 = sphi 0, %s27
    %s44 = sphi 0, %s28
    %s48 = sphi 0, %s48
    %s50 = sphi 0, %s48
    %s51 = sphi 0, %s50
    %s65 = sphi 0, %s51
    %s69 = sphi 0, %s69
    %s71 = sphi 0, %s69
    %s72 = sphi 0, %s71
    %s86 = sphi 0, %s72
    %s90 = sphi 0, %s90
    %s92 = sphi 0, %s90
    %s93 = sphi 0, %s92
    %s107 = sphi 0, %s93
    %s111 = sphi 0, %s111
    %s113 = sphi 0, %s111
    %s114 = sphi 0, %s113
    %s128 = sphi 0, %s114
    %s132 = sphi 0, %s132
    %s134 = sphi 0, %s132
    %s135 = sphi 0, %s134
    %s149 = sphi 0, %s135
    %s153 = sphi 0, %s153
    %s155 = sphi 0, %s153
    %s156 = sphi 0, %s155
    %s170 = sphi 0, %s156
    %s174 = sphi 0, %s174
    %s176 = sphi 0, %s174
    %s177 = sphi 0, %s176
    %s191 = sphi 0, %s177
    %s197 = sphi 0, %s199
    %s200 = sphi 0, %s197
    %s201 = sphi 0, %s200
    %s217 = sphi 0, %s201
  $region4: #{_lambda_.1} parent=0 // loop_header_branch
    %17 = sbr.rel (%p15) target = $region8
  $region5: #{_lambda_.1} parent=0 // loop_body
    %s19 = ssub.s32 %s14, 1
    %s20 = ssub.s32 %s14, 2
    %s21 = sadd.s32 %s14, 1
    %s22 = ssub.s32 %s14, %s21
    %p23 = scmp.eq.s32.totalorder %s22, 0
    %s25 = sadd.s32 %s24, 1
    %s26 = scalar_select %p23, %s24, %s25
    %p29 = pneg %p23
    %p30 = scmp.eq.s32.totalorder %s14, 3
    %p31 = por %p29, %p30
    %p32 = scmp.ne.s32.totalorder %s24, %s27
    %p33 = scmp.eq.s32.totalorder %s14, 0
    %p34 = por %p32, %p33
    %p35 = scmp.ne.s32.totalorder %s24, %s27
    %p36 = scmp.eq.s32.totalorder %s19, 3
    %p37 = por %p35, %p36
    %p38 = scmp.ne.s32.totalorder %s27, %s28
    %p39 = scmp.eq.s32.totalorder %s19, 0
    %p40 = por %p38, %p39
    %p41 = scmp.ne.s32.totalorder %s27, %s28
    %p42 = scmp.eq.s32.totalorder %s20, 3
    %p43 = por %p41, %p42
    %p45 = scmp.ne.s32.totalorder %s28, %s44
    %p46 = scmp.eq.s32.totalorder %s20, 0
    %p47 = por %p45, %p46
    %s49 = sadd.s32 %s48, 1
    %p52 = scmp.eq.s32.totalorder %s14, 3
    %p53 = scmp.ne.s32.totalorder %s48, %s50
    %p54 = scmp.eq.s32.totalorder %s14, 0
    %p55 = por %p53, %p54
    %p56 = scmp.ne.s32.totalorder %s48, %s50
    %p57 = scmp.eq.s32.totalorder %s19, 3
    %p58 = por %p56, %p57
    %p59 = scmp.ne.s32.totalorder %s50, %s51
    %p60 = scmp.eq.s32.totalorder %s19, 0
    %p61 = por %p59, %p60
    %p62 = scmp.ne.s32.totalorder %s50, %s51
    %p63 = scmp.eq.s32.totalorder %s20, 3
    %p64 = por %p62, %p63
    %p66 = scmp.ne.s32.totalorder %s51, %s65
    %p67 = scmp.eq.s32.totalorder %s20, 0
    %p68 = por %p66, %p67
    %s70 = sadd.s32 %s69, 1
    %p73 = scmp.eq.s32.totalorder %s14, 3
    %p74 = scmp.ne.s32.totalorder %s69, %s71
    %p75 = scmp.eq.s32.totalorder %s14, 0
    %p76 = por %p74, %p75
    %p77 = scmp.ne.s32.totalorder %s69, %s71
    %p78 = scmp.eq.s32.totalorder %s19, 3
    %p79 = por %p77, %p78
    %p80 = scmp.ne.s32.totalorder %s71, %s72
    %p81 = scmp.eq.s32.totalorder %s19, 0
    %p82 = por %p80, %p81
    %p83 = scmp.ne.s32.totalorder %s71, %s72
    %p84 = scmp.eq.s32.totalorder %s20, 3
    %p85 = por %p83, %p84
    %p87 = scmp.ne.s32.totalorder %s72, %s86
    %p88 = scmp.eq.s32.totalorder %s20, 0
    %p89 = por %p87, %p88
    %s91 = sadd.s32 %s90, 1
    %p94 = scmp.eq.s32.totalorder %s14, 3
    %p95 = scmp.ne.s32.totalorder %s90, %s92
    %p96 = scmp.eq.s32.totalorder %s14, 0
    %p97 = por %p95, %p96
    %p98 = scmp.ne.s32.totalorder %s90, %s92
    %p99 = scmp.eq.s32.totalorder %s19, 3
    %p100 = por %p98, %p99
    %p101 = scmp.ne.s32.totalorder %s92, %s93
    %p102 = scmp.eq.s32.totalorder %s19, 0
    %p103 = por %p101, %p102
    %p104 = scmp.ne.s32.totalorder %s92, %s93
    %p105 = scmp.eq.s32.totalorder %s20, 3
    %p106 = por %p104, %p105
    %p108 = scmp.ne.s32.totalorder %s93, %s107
    %p109 = scmp.eq.s32.totalorder %s20, 0
    %p110 = por %p108, %p109
    %s112 = sadd.s32 %s111, 1
    %p115 = scmp.eq.s32.totalorder %s14, 3
    %p116 = scmp.ne.s32.totalorder %s111, %s113
    %p117 = scmp.eq.s32.totalorder %s14, 0
    %p118 = por %p116, %p117
    %p119 = scmp.ne.s32.totalorder %s111, %s113
    %p120 = scmp.eq.s32.totalorder %s19, 3
    %p121 = por %p119, %p120
    %p122 = scmp.ne.s32.totalorder %s113, %s114
    %p123 = scmp.eq.s32.totalorder %s19, 0
    %p124 = por %p122, %p123
    %p125 = scmp.ne.s32.totalorder %s113, %s114
    %p126 = scmp.eq.s32.totalorder %s20, 3
    %p127 = por %p125, %p126
    %p129 = scmp.ne.s32.totalorder %s114, %s128
    %p130 = scmp.eq.s32.totalorder %s20, 0
    %p131 = por %p129, %p130
    %s133 = sadd.s32 %s132, 1
    %p136 = scmp.eq.s32.totalorder %s14, 3
    %p137 = scmp.ne.s32.totalorder %s132, %s134
    %p138 = scmp.eq.s32.totalorder %s14, 0
    %p139 = por %p137, %p138
    %p140 = scmp.ne.s32.totalorder %s132, %s134
    %p141 = scmp.eq.s32.totalorder %s19, 3
    %p142 = por %p140, %p141
    %p143 = scmp.ne.s32.totalorder %s134, %s135
    %p144 = scmp.eq.s32.totalorder %s19, 0
    %p145 = por %p143, %p144
    %p146 = scmp.ne.s32.totalorder %s134, %s135
    %p147 = scmp.eq.s32.totalorder %s20, 3
    %p148 = por %p146, %p147
    %p150 = scmp.ne.s32.totalorder %s135, %s149
    %p151 = scmp.eq.s32.totalorder %s20, 0
    %p152 = por %p150, %p151
    %s154 = sadd.s32 %s153, 1
    %p157 = scmp.eq.s32.totalorder %s14, 3
    %p158 = scmp.ne.s32.totalorder %s153, %s155
    %p159 = scmp.eq.s32.totalorder %s14, 0
    %p160 = por %p158, %p159
    %p161 = scmp.ne.s32.totalorder %s153, %s155
    %p162 = scmp.eq.s32.totalorder %s19, 3
    %p163 = por %p161, %p162
    %p164 = scmp.ne.s32.totalorder %s155, %s156
    %p165 = scmp.eq.s32.totalorder %s19, 0
    %p166 = por %p164, %p165
    %p167 = scmp.ne.s32.totalorder %s155, %s156
    %p168 = scmp.eq.s32.totalorder %s20, 3
    %p169 = por %p167, %p168
    %p171 = scmp.ne.s32.totalorder %s156, %s170
    %p172 = scmp.eq.s32.totalorder %s20, 0
    %p173 = por %p171, %p172
    %s175 = sadd.s32 %s174, 1
    %p178 = scmp.eq.s32.totalorder %s14, 3
    %p179 = scmp.ne.s32.totalorder %s174, %s176
    %p180 = scmp.eq.s32.totalorder %s14, 0
    %p181 = por %p179, %p180
    %p182 = scmp.ne.s32.totalorder %s174, %s176
    %p183 = scmp.eq.s32.totalorder %s19, 3
    %p184 = por %p182, %p183
    %p185 = scmp.ne.s32.totalorder %s176, %s177
    %p186 = scmp.eq.s32.totalorder %s19, 0
    %p187 = por %p185, %p186
    %p188 = scmp.ne.s32.totalorder %s176, %s177
    %p189 = scmp.eq.s32.totalorder %s20, 3
    %p190 = por %p188, %p189
    %p192 = scmp.ne.s32.totalorder %s177, %s191
    %p193 = scmp.eq.s32.totalorder %s20, 0
    %p194 = por %p192, %p193
    %s195 = ssub.s32 %s14, %s21
    %p196 = scmp.eq.s32.totalorder %s195, 0
    %s198 = sadd.s32 %s197, 1
    %s199 = scalar_select %p196, %s197, %s198
    %p202 = pneg %p196
    %p203 = scmp.eq.s32.totalorder %s14, 3
    %p204 = por %p202, %p203
    %p205 = scmp.ne.s32.totalorder %s197, %s200
    %p206 = scmp.eq.s32.totalorder %s14, 0
    %p207 = por %p205, %p206
    %p208 = scmp.ne.s32.totalorder %s197, %s200
    %p209 = scmp.eq.s32.totalorder %s19, 3
    %p210 = por %p208, %p209
    %p211 = scmp.ne.s32.totalorder %s200, %s201
    %p212 = scmp.eq.s32.totalorder %s19, 0
    %p213 = por %p211, %p212
    %p214 = scmp.ne.s32.totalorder %s200, %s201
    %p215 = scmp.eq.s32.totalorder %s20, 3
    %p216 = por %p214, %p215
    %p218 = scmp.ne.s32.totalorder %s201, %s217
    %p219 = scmp.eq.s32.totalorder %s20, 0
    %p220 = por %p218, %p219
    %p221 = scmp.le.s32.totalorder 1, %s14
    %p222 = scmp.lt.s32.totalorder %s14, 5
    %p223 = pnand %p221, %p222
    %p224 = pneg %p223
    // Predicated region
    $region9: #{_lambda_.1} parent=5 // pred_check
      _
    $region10: #{_lambda_.1} parent=5 // pred_check_branch
      %226 = sbr.rel (%p223) target = $region12
    $region11: #{_lambda_.1} parent=5 // pred_region
      %s227 = ssub.s32 %s14, 1
      // Predicated region
      $region13: #{_lambda_.1} parent=11 // pred_check
        %p228 = pneg %p61
      $region14: #{_lambda_.1} parent=11 // pred_check_branch
        %230 = sbr.rel (%p228) target = $region16
      $region15: #{_lambda_.1} parent=11 // pred_region
        _
      $region16: #{_lambda_.1} parent=11 // pred_fallthru
        _
      // Predicated region
      $region17: #{_lambda_.1} parent=11 // pred_check
        %p231 = pneg %p82
      $region18: #{_lambda_.1} parent=11 // pred_check_branch
        %233 = sbr.rel (%p231) target = $region20
      $region19: #{_lambda_.1} parent=11 // pred_region
        _
      $region20: #{_lambda_.1} parent=11 // pred_fallthru
        _
      // Predicated region
      $region21: #{_lambda_.1} parent=11 // pred_check
        %p234 = pneg %p103
      $region22: #{_lambda_.1} parent=11 // pred_check_branch
        %236 = sbr.rel (%p234) target = $region24
      $region23: #{_lambda_.1} parent=11 // pred_region
        _
      $region24: #{_lambda_.1} parent=11 // pred_fallthru
        _
      // Predicated region
      $region25: #{_lambda_.1} parent=11 // pred_check
        %p237 = pneg %p124
      $region26: #{_lambda_.1} parent=11 // pred_check_branch
        %239 = sbr.rel (%p237) target = $region28
      $region27: #{_lambda_.1} parent=11 // pred_region
        _
      $region28: #{_lambda_.1} parent=11 // pred_fallthru
        _
      // Predicated region
      $region29: #{_lambda_.1} parent=11 // pred_check
        %p240 = pneg %p145
      $region30: #{_lambda_.1} parent=11 // pred_check_branch
        %242 = sbr.rel (%p240) target = $region32
      $region31: #{_lambda_.1} parent=11 // pred_region
        _
      $region32: #{_lambda_.1} parent=11 // pred_fallthru
        _
      // Predicated region
      $region33: #{_lambda_.1} parent=11 // pred_check
        %p243 = pneg %p166
      $region34: #{_lambda_.1} parent=11 // pred_check_branch
        %245 = sbr.rel (%p243) target = $region36
      $region35: #{_lambda_.1} parent=11 // pred_region
        _
      $region36: #{_lambda_.1} parent=11 // pred_fallthru
        _
      // Predicated region
      $region37: #{_lambda_.1} parent=11 // pred_check
        %p246 = pneg %p187
      $region38: #{_lambda_.1} parent=11 // pred_check_branch
        %248 = sbr.rel (%p246) target = $region40
      $region39: #{_lambda_.1} parent=11 // pred_region
        _
      $region40: #{_lambda_.1} parent=11 // pred_fallthru
        _
    $region12: #{_lambda_.1} parent=5 // pred_fallthru
      _
    %p249 = scmp.lt.s32.totalorder %s14, 4
    // Predicated region
    $region41: #{_lambda_.1} parent=5 // pred_check
      %p250 = pneg %p249
    $region42: #{_lambda_.1} parent=5 // pred_check_branch
      %252 = sbr.rel (%p250) target = $region44
    $region43: #{_lambda_.1} parent=5 // pred_region
      // Predicated region
      $region45: #{_lambda_.1} parent=43 // pred_check
        %p253 = pneg %p34
      $region46: #{_lambda_.1} parent=43 // pred_check_branch
        %255 = sbr.rel (%p253) target = $region48
      $region47: #{_lambda_.1} parent=43 // pred_region
        %s256 = smul.u32 2, %s14
        %p257 = scmp.lt.s32.totalorder %s256, 7
        %s258 = scalar_select %p257, %s256, 7
        %s259 = smul.addr %s258, 16
        %s260 = smul.addr %s259, 8
        %s261 = scalar_lea.vmem %s0, %s260
        %s262 = smul.u32 2, %s14
      $region48: #{_lambda_.1} parent=43 // pred_fallthru
        _
    $region44: #{_lambda_.1} parent=5 // pred_fallthru
      _
    %p263 = scmp.le.s32.totalorder 1, %s14
    %p264 = scmp.lt.s32.totalorder %s14, 5
    %p265 = pnand %p263, %p264
    %p266 = pneg %p265
    // Predicated region
    $region49: #{_lambda_.1} parent=5 // pred_check
      _
    $region50: #{_lambda_.1} parent=5 // pred_check_branch
      %268 = sbr.rel (%p265) target = $region52
    $region51: #{_lambda_.1} parent=5 // pred_region
      %s269 = ssub.s32 %s14, 1
      %s270 = smul.u32 2, %s19
      %p271 = scmp.lt.s32.totalorder %s270, 7
      %s272 = scalar_select %p271, %s270, 7
      %s273 = smul.addr %s272, 16
      %s274 = smul.addr %s273, 8
      %s275 = scalar_lea.vmem %s0, %s274
      %p276 = pneg %p40
      %p277 = pneg %p37
      %p278 = pneg %p61
      %p279 = pneg %p58
      %p280 = pneg %p82
      %p281 = pneg %p79
      %p282 = pneg %p103
      %p283 = pneg %p100
      %p284 = pneg %p124
      %p285 = pneg %p121
      %p286 = pneg %p145
      %p287 = pneg %p142
      %p288 = pneg %p166
      %p289 = pneg %p163
      %p290 = pneg %p187
      %p291 = pneg %p184
      %p292 = pneg %p213
      %p293 = pneg %p210
      %s294 = smul.u32 2, %s19
      %p295 = scmp.lt.s32.totalorder %s294, 7
      %s296 = scalar_select %p295, %s294, 7
      %s297 = smul.addr %s296, 16
      %s298 = smul.addr %s297, 8
      %s299 = scalar_lea.vmem %s8, %s298
      %s300 = smul.u32 2, %s19
      %p301 = scmp.lt.s32.totalorder %s300, 7
      %s302 = scalar_select %p301, %s300, 7
      %s303 = smul.addr %s302, 16
      %s304 = smul.addr %s303, 8
      %s305 = scalar_lea.vmem %s0, %s304
      %s306 = smul.u32 2, %s19
      %s307 = smul.u32 2, %s19
      %p308 = scmp.lt.s32.totalorder %s307, 7
      %s309 = scalar_select %p308, %s307, 7
      %s310 = smul.addr %s309, 16
      %s311 = smul.addr %s310, 8
      %s312 = scalar_lea.vmem %s8, %s311
      %s313 = smul.u32 2, %s19
      %v314 = vld [vmem:[%s1] sm:$0xff]
      %v315 = vld [vmem:[%s1 + $0x8] sm:$0xff]
      %v316 = vld [vmem:[%s1 + $0x10] sm:$0xff]
      %v317 = vld [vmem:[%s1 + $0x18] sm:$0xff]
      %v318 = vld [vmem:[%s1 + $0x20] sm:$0xff]
      %v319 = vld [vmem:[%s1 + $0x28] sm:$0xff]
      %v320 = vld [vmem:[%s1 + $0x30] sm:$0xff]
      %v321 = vld [vmem:[%s1 + $0x38] sm:$0xff]
      %v322 = vld [vmem:[%s1 + $0x40] sm:$0xff]
      %v323 = vld [vmem:[%s1 + $0x48] sm:$0xff]
      %v324 = vld [vmem:[%s1 + $0x50] sm:$0xff]
      %v325 = vld [vmem:[%s1 + $0x58] sm:$0xff]
      %v326 = vld [vmem:[%s1 + $0x60] sm:$0xff]
      %v327 = vld [vmem:[%s1 + $0x68] sm:$0xff]
      %v328 = vld [vmem:[%s1 + $0x70] sm:$0xff]
      %v329 = vld [vmem:[%s1 + $0x78] sm:$0xff]
      %v330 = vld [vmem:[%s1 + $0x80] sm:$0xff]
      %v331 = vld [vmem:[%s1 + $0x88] sm:$0xff]
      %v332 = vld [vmem:[%s1 + $0x90] sm:$0xff]
      %v333 = vld [vmem:[%s1 + $0x98] sm:$0xff]
      %v334 = vld [vmem:[%s1 + $0xa0] sm:$0xff]
      %v335 = vld [vmem:[%s1 + $0xa8] sm:$0xff]
      %v336 = vld [vmem:[%s1 + $0xb0] sm:$0xff]
      %v337 = vld [vmem:[%s1 + $0xb8] sm:$0xff]
      %v338 = vld [vmem:[%s1 + $0xc0] sm:$0xff]
      %v339 = vld [vmem:[%s1 + $0xc8] sm:$0xff]
      %v340 = vld [vmem:[%s1 + $0xd0] sm:$0xff]
      %v341 = vld [vmem:[%s1 + $0xd8] sm:$0xff]
      %v342 = vld [vmem:[%s1 + $0xe0] sm:$0xff]
      %v343 = vld [vmem:[%s1 + $0xe8] sm:$0xff]
      %v344 = vld [vmem:[%s1 + $0xf0] sm:$0xff]
      %v345 = vld [vmem:[%s1 + $0xf8] sm:$0xff]
      %v346 = vld [vmem:[%s2] sm:$0xff]
      %v347 = vld [vmem:[%s2 + $0x8] sm:$0xff]
      %v348 = vld [vmem:[%s2 + $0x10] sm:$0xff]
      %v349 = vld [vmem:[%s2 + $0x18] sm:$0xff]
      %v350 = vld [vmem:[%s3] sm:$0xff]
      %v351 = vld [vmem:[%s3 + $0x8] sm:$0xff]
      %v352 = vld [vmem:[%s3 + $0x10] sm:$0xff]
      %v353 = vld [vmem:[%s3 + $0x18] sm:$0xff]
      %v354 = vld [vmem:[%s4] sm:$0xff]
      %v355 = vld [vmem:[%s5] sm:$0xff]
      %v356 = vld [vmem:[%s6] sm:$0xff]
      %v357 = vld [vmem:[%s6 + $0x8] sm:$0xff]
      %v358 = vld [vmem:[%s6 + $0x10] sm:$0xff]
      %v359 = vld [vmem:[%s6 + $0x18] sm:$0xff]
      %v360 = vld [vmem:[%s6 + $0x20] sm:$0xff]
      %v361 = vld [vmem:[%s6 + $0x28] sm:$0xff]
      %v362 = vld [vmem:[%s6 + $0x30] sm:$0xff]
      %v363 = vld [vmem:[%s6 + $0x38] sm:$0xff]
      %v364 = vld [vmem:[%s6 + $0x40] sm:$0xff]
      %v365 = vld [vmem:[%s6 + $0x48] sm:$0xff]
      %v366 = vld [vmem:[%s6 + $0x50] sm:$0xff]
      %v367 = vld [vmem:[%s6 + $0x58] sm:$0xff]
      %v368 = vld [vmem:[%s6 + $0x60] sm:$0xff]
      %v369 = vld [vmem:[%s6 + $0x68] sm:$0xff]
      %v370 = vld [vmem:[%s6 + $0x70] sm:$0xff]
      %v371 = vld [vmem:[%s6 + $0x78] sm:$0xff]
      %v372 = vld [vmem:[%s7] sm:$0xff]
      %v373 = vld [vmem:[%s7 + $0x8] sm:$0xff]
      %v374 = vld [vmem:[%s7 + $0x10] sm:$0xff]
      %v375 = vld [vmem:[%s7 + $0x18] sm:$0xff]
      %v376 = vld [vmem:[%s7 + $0x20] sm:$0xff]
      %v377 = vld [vmem:[%s7 + $0x28] sm:$0xff]
      %v378 = vld [vmem:[%s7 + $0x30] sm:$0xff]
      %v379 = vld [vmem:[%s7 + $0x38] sm:$0xff]
      %v380 = vld [vmem:[%s7 + $0x40] sm:$0xff]
      %v381 = vld [vmem:[%s7 + $0x48] sm:$0xff]
      %v382 = vld [vmem:[%s7 + $0x50] sm:$0xff]
      %v383 = vld [vmem:[%s7 + $0x58] sm:$0xff]
      %v384 = vld [vmem:[%s7 + $0x60] sm:$0xff]
      %v385 = vld [vmem:[%s7 + $0x68] sm:$0xff]
      %v386 = vld [vmem:[%s7 + $0x70] sm:$0xff]
      %v387 = vld [vmem:[%s7 + $0x78] sm:$0xff]
      %v388 = vld [vmem:[%s305] sm:$0xff]
      %v389 = vld [vmem:[%s305 + $0x8] sm:$0xff]
      %v390 = vld [vmem:[%s305 + $0x10] sm:$0xff]
      %v391 = vld [vmem:[%s305 + $0x18] sm:$0xff]
      %v392 = vld [vmem:[%s305 + $0x20] sm:$0xff]
      %v393 = vld [vmem:[%s305 + $0x28] sm:$0xff]
      %v394 = vld [vmem:[%s305 + $0x30] sm:$0xff]
      %v395 = vld [vmem:[%s305 + $0x38] sm:$0xff]
      %v396 = vld [vmem:[%s305 + $0x40] sm:$0xff]
      %v397 = vld [vmem:[%s305 + $0x48] sm:$0xff]
      %v398 = vld [vmem:[%s305 + $0x50] sm:$0xff]
      %v399 = vld [vmem:[%s305 + $0x58] sm:$0xff]
      %v400 = vld [vmem:[%s305 + $0x60] sm:$0xff]
      %v401 = vld [vmem:[%s305 + $0x68] sm:$0xff]
      %v402 = vld [vmem:[%s305 + $0x70] sm:$0xff]
      %v403 = vld [vmem:[%s305 + $0x78] sm:$0xff]
      %vm404 = vcmask 523264
      %v406 = vsel %vm404, %v354, 0
      %408 = vmatprep.subr.mxu0 %v389
      %409 = vmatpush1.msra.mxu0 %v388
      %410 = vmatprep.subr.mxu0 %v391
      %411 = vmatpush1.msra.mxu0 %v390
      %412 = vmatprep.subr.mxu0 %v393
      %413 = vmatpush1.msra.mxu0 %v392
      %414 = vmatprep.subr.mxu0 %v395
      %415 = vmatpush1.msra.mxu0 %v394
      %416 = vmatprep.subr.mxu0 %v397
      %417 = vmatpush1.msra.mxu0 %v396
      %418 = vmatprep.subr.mxu0 %v399
      %419 = vmatpush1.msra.mxu0 %v398
      %420 = vmatprep.subr.mxu0 %v401
      %421 = vmatpush1.msra.mxu0 %v400
      %422 = vmatprep.subr.mxu0 %v403
      %423 = vmatpush1.msra.mxu0 %v402
      %424 = vmatprep.subr.mxu0 0.0
      %425 = vmatpush1.msra.mxu0 0.0
      %426 = vmatprep.subr.mxu0 0.0
      %427 = vmatpush1.msra.mxu0 0.0
      %428 = vmatprep.subr.mxu0 0.0
      %429 = vmatpush1.msra.mxu0 0.0
      %430 = vmatprep.subr.mxu0 0.0
      %431 = vmatpush1.msra.mxu0 0.0
      %432 = vmatprep.subr.mxu0 0.0
      %433 = vmatpush1.msra.mxu0 0.0
      %434 = vmatprep.subr.mxu0 0.0
      %435 = vmatpush1.msra.mxu0 0.0
      %436 = vmatprep.subr.mxu0 0.0
      %437 = vmatpush1.msra.mxu0 0.0
      %438 = vmatprep.subr.mxu0 0.0
      %439 = vmatpush1.msra.mxu0 0.0
      %440 = vmatprep.subr.mxu0 0.0
      %441 = vmatpush1.msra.mxu0 0.0
      %442 = vmatprep.subr.mxu0 0.0
      %443 = vmatpush1.msra.mxu0 0.0
      %444 = vmatprep.subr.mxu0 0.0
      %445 = vmatpush1.msra.mxu0 0.0
      %446 = vmatprep.subr.mxu0 0.0
      %447 = vmatpush1.msra.mxu0 0.0
      %448 = vmatprep.subr.mxu0 0.0
      %449 = vmatpush1.msra.mxu0 0.0
      %450 = vmatprep.subr.mxu0 0.0
      %451 = vmatpush1.msra.mxu0 0.0
      %452 = vmatprep.subr.mxu0 0.0
      %453 = vmatpush1.msra.mxu0 0.0
      %454 = vmatprep.subr.mxu0 0.0
      %455 = vmatpush1.msra.mxu0 0.0
      %456 = vmatprep.subr.mxu0 0.0
      %457 = vmatpush1.msra.mxu0 0.0
      %458 = vmatprep.subr.mxu0 0.0
      %459 = vmatpush1.msra.mxu0 0.0
      %460 = vmatprep.subr.mxu0 0.0
      %461 = vmatpush1.msra.mxu0 0.0
      %462 = vmatprep.subr.mxu0 0.0
      %463 = vmatpush1.msra.mxu0 0.0
      %464 = vmatprep.subr.mxu0 0.0
      %465 = vmatpush1.msra.mxu0 0.0
      %466 = vmatprep.subr.mxu0 0.0
      %467 = vmatpush1.msra.mxu0 0.0
      %468 = vmatprep.subr.mxu0 0.0
      %469 = vmatpush1.msra.mxu0 0.0
      %470 = vmatprep.subr.mxu0 0.0
      %471 = vmatpush1.msra.mxu0 0.0
      %472 = vmatprep.mubr.f32.mxu0 0.0
      %473 = vmatmul.mubr.f32.gmra.mrb[0].mxu0 %v406
      %v474 = vpop.f32.mrb[0].mxu0
      %v475 = vadd.f32 0.0, %v474
      %v476 = vpop.f32.mrb[0].mxu0
      %v477 = vadd.f32 0.0, %v476
      %478 = vdwg.mxu0
      %480 = vset.pattern.permute.xlu0 0
      %481 = vperm.xlu0 %480, %v355
      %v482 = vpop.permute.xlu0 %481
      %484 = vmatprep.subr.mxu0 0.0
      %485 = vmatpush1.msra.mxu0 %v314
      %486 = vmatprep.subr.mxu0 0.0
      %487 = vmatpush1.msra.mxu0 %v315
      %488 = vmatprep.subr.mxu0 0.0
      %489 = vmatpush1.msra.mxu0 %v316
      %490 = vmatprep.subr.mxu0 0.0
      %491 = vmatpush1.msra.mxu0 %v317
      %492 = vmatprep.subr.mxu0 0.0
      %493 = vmatpush1.msra.mxu0 %v318
      %494 = vmatprep.subr.mxu0 0.0
      %495 = vmatpush1.msra.mxu0 %v319
      %496 = vmatprep.subr.mxu0 0.0
      %497 = vmatpush1.msra.mxu0 %v320
      %498 = vmatprep.subr.mxu0 0.0
      %499 = vmatpush1.msra.mxu0 %v321
      %500 = vmatprep.subr.mxu0 0.0
      %501 = vmatpush1.msra.mxu0 %v322
      %502 = vmatprep.subr.mxu0 0.0
      %503 = vmatpush1.msra.mxu0 %v323
      %504 = vmatprep.subr.mxu0 0.0
      %505 = vmatpush1.msra.mxu0 %v324
      %506 = vmatprep.subr.mxu0 0.0
      %507 = vmatpush1.msra.mxu0 %v325
      %508 = vmatprep.subr.mxu0 0.0
      %509 = vmatpush1.msra.mxu0 %v326
      %510 = vmatprep.subr.mxu0 0.0
      %511 = vmatpush1.msra.mxu0 %v327
      %512 = vmatprep.subr.mxu0 0.0
      %513 = vmatpush1.msra.mxu0 %v328
      %514 = vmatprep.subr.mxu0 0.0
      %515 = vmatpush1.msra.mxu0 %v329
      %516 = vmatprep.subr.mxu0 0.0
      %517 = vmatpush1.msra.mxu0 %v330
      %518 = vmatprep.subr.mxu0 0.0
      %519 = vmatpush1.msra.mxu0 %v331
      %520 = vmatprep.subr.mxu0 0.0
      %521 = vmatpush1.msra.mxu0 %v332
      %522 = vmatprep.subr.mxu0 0.0
      %523 = vmatpush1.msra.mxu0 %v333
      %524 = vmatprep.subr.mxu0 0.0
      %525 = vmatpush1.msra.mxu0 %v334
      %526 = vmatprep.subr.mxu0 0.0
      %527 = vmatpush1.msra.mxu0 %v335
      %528 = vmatprep.subr.mxu0 0.0
      %529 = vmatpush1.msra.mxu0 %v336
      %530 = vmatprep.subr.mxu0 0.0
      %531 = vmatpush1.msra.mxu0 %v337
      %532 = vmatprep.subr.mxu0 0.0
      %533 = vmatpush1.msra.mxu0 %v338
      %534 = vmatprep.subr.mxu0 0.0
      %535 = vmatpush1.msra.mxu0 %v339
      %536 = vmatprep.subr.mxu0 0.0
      %537 = vmatpush1.msra.mxu0 %v340
      %538 = vmatprep.subr.mxu0 0.0
      %539 = vmatpush1.msra.mxu0 %v341
      %540 = vmatprep.subr.mxu0 0.0
      %541 = vmatpush1.msra.mxu0 %v342
      %542 = vmatprep.subr.mxu0 0.0
      %543 = vmatpush1.msra.mxu0 %v343
      %544 = vmatprep.subr.mxu0 0.0
      %545 = vmatpush1.msra.mxu0 %v344
      %546 = vmatprep.subr.mxu0 0.0
      %547 = vmatpush1.msra.mxu0 %v345
      %548 = vmatprep.mubr.f32.mxu0 %v477
      %549 = vmatmul.mubr.f32.gmra.mrb[0].mxu0 %v475
      %v550 = vpop.f32.mrb[0].mxu0
      %v551 = vadd.f32 %v482, %v550
      %v552 = vpop.f32.mrb[0].mxu0
      %553 = vdwg.mxu0
      %v554 = vmax.f32 %v551, 0.0
      %556 = vset.pattern.permute.xlu0 0
      %557 = vperm.xlu0 %556, %v372
      %v558 = vpop.permute.xlu0 %557
      %561 = vset.pattern.permute.xlu0 0
      %562 = vperm.xlu0 %561, %v373
      %v563 = vpop.permute.xlu0 %562
      %566 = vset.pattern.permute.xlu0 0
      %567 = vperm.xlu0 %566, %v374
      %v568 = vpop.permute.xlu0 %567
      %571 = vset.pattern.permute.xlu0 0
      %572 = vperm.xlu0 %571, %v375
      %v573 = vpop.permute.xlu0 %572
      %576 = vset.pattern.permute.xlu0 0
      %577 = vperm.xlu0 %576, %v376
      %v578 = vpop.permute.xlu0 %577
      %581 = vset.pattern.permute.xlu0 0
      %582 = vperm.xlu0 %581, %v377
      %v583 = vpop.permute.xlu0 %582
      %586 = vset.pattern.permute.xlu0 0
      %587 = vperm.xlu0 %586, %v378
      %v588 = vpop.permute.xlu0 %587
      %591 = vset.pattern.permute.xlu0 0
      %592 = vperm.xlu0 %591, %v379
      %v593 = vpop.permute.xlu0 %592
      %596 = vset.pattern.permute.xlu0 0
      %597 = vperm.xlu0 %596, %v380
      %v598 = vpop.permute.xlu0 %597
      %601 = vset.pattern.permute.xlu0 0
      %602 = vperm.xlu0 %601, %v381
      %v603 = vpop.permute.xlu0 %602
      %606 = vset.pattern.permute.xlu0 0
      %607 = vperm.xlu0 %606, %v382
      %v608 = vpop.permute.xlu0 %607
      %611 = vset.pattern.permute.xlu0 0
      %612 = vperm.xlu0 %611, %v383
      %v613 = vpop.permute.xlu0 %612
      %616 = vset.pattern.permute.xlu0 0
      %617 = vperm.xlu0 %616, %v384
      %v618 = vpop.permute.xlu0 %617
      %621 = vset.pattern.permute.xlu0 0
      %622 = vperm.xlu0 %621, %v385
      %v623 = vpop.permute.xlu0 %622
      %626 = vset.pattern.permute.xlu0 0
      %627 = vperm.xlu0 %626, %v386
      %v628 = vpop.permute.xlu0 %627
      %631 = vset.pattern.permute.xlu0 0
      %632 = vperm.xlu0 %631, %v387
      %v633 = vpop.permute.xlu0 %632
      %vm635 = vcmask 64512
      %v637 = vsel %vm635, %v356, 0
      %v640 = vsel %vm635, %v357, 0
      %v643 = vsel %vm635, %v358, 0
      %v646 = vsel %vm635, %v359, 0
      %v649 = vsel %vm635, %v360, 0
      %v652 = vsel %vm635, %v361, 0
      %v655 = vsel %vm635, %v362, 0
      %v658 = vsel %vm635, %v363, 0
      %v661 = vsel %vm635, %v364, 0
      %v664 = vsel %vm635, %v365, 0
      %v667 = vsel %vm635, %v366, 0
      %v670 = vsel %vm635, %v367, 0
      %v673 = vsel %vm635, %v368, 0
      %v676 = vsel %vm635, %v369, 0
      %v679 = vsel %vm635, %v370, 0
      %v682 = vsel %vm635, %v371, 0
      %684 = vmatprep.subr.mxu0 0.0
      %685 = vmatpush1.msra.mxu0 %v554
      %686 = vmatprep.subr.mxu0 0.0
      %687 = vmatpush1.msra.mxu0 0.0
      %688 = vmatprep.subr.mxu0 0.0
      %689 = vmatpush1.msra.mxu0 0.0
      %690 = vmatprep.subr.mxu0 0.0
      %691 = vmatpush1.msra.mxu0 0.0
      %692 = vmatprep.subr.mxu0 0.0
      %693 = vmatpush1.msra.mxu0 0.0
      %694 = vmatprep.subr.mxu0 0.0
      %695 = vmatpush1.msra.mxu0 0.0
      %696 = vmatprep.subr.mxu0 0.0
      %697 = vmatpush1.msra.mxu0 0.0
      %698 = vmatprep.subr.mxu0 0.0
      %699 = vmatpush1.msra.mxu0 0.0
      %700 = vmatprep.subr.mxu0 0.0
      %701 = vmatpush1.msra.mxu0 0.0
      %702 = vmatprep.subr.mxu0 0.0
      %703 = vmatpush1.msra.mxu0 0.0
      %704 = vmatprep.subr.mxu0 0.0
      %705 = vmatpush1.msra.mxu0 0.0
      %706 = vmatprep.subr.mxu0 0.0
      %707 = vmatpush1.msra.mxu0 0.0
      %708 = vmatprep.subr.mxu0 0.0
      %709 = vmatpush1.msra.mxu0 0.0
      %710 = vmatprep.subr.mxu0 0.0
      %711 = vmatpush1.msra.mxu0 0.0
      %712 = vmatprep.subr.mxu0 0.0
      %713 = vmatpush1.msra.mxu0 0.0
      %714 = vmatprep.subr.mxu0 0.0
      %715 = vmatpush1.msra.mxu0 0.0
      %716 = vmatprep.subr.mxu0 0.0
      %717 = vmatpush1.msra.mxu0 0.0
      %718 = vmatprep.subr.mxu0 0.0
      %719 = vmatpush1.msra.mxu0 0.0
      %720 = vmatprep.subr.mxu0 0.0
      %721 = vmatpush1.msra.mxu0 0.0
      %722 = vmatprep.subr.mxu0 0.0
      %723 = vmatpush1.msra.mxu0 0.0
      %724 = vmatprep.subr.mxu0 0.0
      %725 = vmatpush1.msra.mxu0 0.0
      %726 = vmatprep.subr.mxu0 0.0
      %727 = vmatpush1.msra.mxu0 0.0
      %728 = vmatprep.subr.mxu0 0.0
      %729 = vmatpush1.msra.mxu0 0.0
      %730 = vmatprep.subr.mxu0 0.0
      %731 = vmatpush1.msra.mxu0 0.0
      %732 = vmatprep.subr.mxu0 0.0
      %733 = vmatpush1.msra.mxu0 0.0
      %734 = vmatprep.subr.mxu0 0.0
      %735 = vmatpush1.msra.mxu0 0.0
      %736 = vmatprep.subr.mxu0 0.0
      %737 = vmatpush1.msra.mxu0 0.0
      %738 = vmatprep.subr.mxu0 0.0
      %739 = vmatpush1.msra.mxu0 0.0
      %740 = vmatprep.subr.mxu0 0.0
      %741 = vmatpush1.msra.mxu0 0.0
      %742 = vmatprep.subr.mxu0 0.0
      %743 = vmatpush1.msra.mxu0 0.0
      %744 = vmatprep.subr.mxu0 0.0
      %745 = vmatpush1.msra.mxu0 0.0
      %746 = vmatprep.subr.mxu0 0.0
      %747 = vmatpush1.msra.mxu0 0.0
      %748 = vmatprep.mubr.f32.mxu0 0.0
      %749 = vmatmul.mubr.f32.gmra.mrb[0].mxu0 %v637
      %v750 = vpop.f32.mrb[0].mxu0
      %v751 = vadd.f32 %v558, %v750
      %v752 = vpop.f32.mrb[0].mxu0
      %753 = vmatprep.mubr.f32.mxu0 0.0
      %754 = vmatmul.mubr.f32.gmra.mrb[0].mxu0 %v640
      %v755 = vpop.f32.mrb[0].mxu0
      %v756 = vadd.f32 %v563, %v755
      %v757 = vpop.f32.mrb[0].mxu0
      %758 = vmatprep.mubr.f32.mxu0 0.0
      %759 = vmatmul.mubr.f32.gmra.mrb[0].mxu0 %v643
      %v760 = vpop.f32.mrb[0].mxu0
      %v761 = vadd.f32 %v568, %v760
      %v762 = vpop.f32.mrb[0].mxu0
      %763 = vmatprep.mubr.f32.mxu0 0.0
      %764 = vmatmul.mubr.f32.gmra.mrb[0].mxu0 %v646
      %v765 = vpop.f32.mrb[0].mxu0
      %v766 = vadd.f32 %v573, %v765
      %v767 = vpop.f32.mrb[0].mxu0
      %768 = vmatprep.mubr.f32.mxu0 0.0
      %769 = vmatmul.mubr.f32.gmra.mrb[0].mxu0 %v649
      %v770 = vpop.f32.mrb[0].mxu0
      %v771 = vadd.f32 %v578, %v770
      %v772 = vpop.f32.mrb[0].mxu0
      %773 = vmatprep.mubr.f32.mxu0 0.0
      %774 = vmatmul.mubr.f32.gmra.mrb[0].mxu0 %v652
      %v775 = vpop.f32.mrb[0].mxu0
      %v776 = vadd.f32 %v583, %v775
      %v777 = vpop.f32.mrb[0].mxu0
      %778 = vmatprep.mubr.f32.mxu0 0.0
      %779 = vmatmul.mubr.f32.gmra.mrb[0].mxu0 %v655
      %v780 = vpop.f32.mrb[0].mxu0
      %v781 = vadd.f32 %v588, %v780
      %v782 = vpop.f32.mrb[0].mxu0
      %783 = vmatprep.mubr.f32.mxu0 0.0
      %784 = vmatmul.mubr.f32.gmra.mrb[0].mxu0 %v658
      %v785 = vpop.f32.mrb[0].mxu0
      %v786 = vadd.f32 %v593, %v785
      %v787 = vpop.f32.mrb[0].mxu0
      %788 = vmatprep.mubr.f32.mxu0 0.0
      %789 = vmatmul.mubr.f32.gmra.mrb[0].mxu0 %v661
      %v790 = vpop.f32.mrb[0].mxu0
      %v791 = vadd.f32 %v598, %v790
      %v792 = vpop.f32.mrb[0].mxu0
      %793 = vmatprep.mubr.f32.mxu0 0.0
      %794 = vmatmul.mubr.f32.gmra.mrb[0].mxu0 %v664
      %v795 = vpop.f32.mrb[0].mxu0
      %v796 = vadd.f32 %v603, %v795
      %v797 = vpop.f32.mrb[0].mxu0
      %798 = vmatprep.mubr.f32.mxu0 0.0
      %799 = vmatmul.mubr.f32.gmra.mrb[0].mxu0 %v667
      %v800 = vpop.f32.mrb[0].mxu0
      %v801 = vadd.f32 %v608, %v800
      %v802 = vpop.f32.mrb[0].mxu0
      %803 = vmatprep.mubr.f32.mxu0 0.0
      %804 = vmatmul.mubr.f32.gmra.mrb[0].mxu0 %v670
      %v805 = vpop.f32.mrb[0].mxu0
      %v806 = vadd.f32 %v613, %v805
      %v807 = vpop.f32.mrb[0].mxu0
      %808 = vmatprep.mubr.f32.mxu0 0.0
      %809 = vmatmul.mubr.f32.gmra.mrb[0].mxu0 %v673
      %v810 = vpop.f32.mrb[0].mxu0
      %v811 = vadd.f32 %v618, %v810
      %v812 = vpop.f32.mrb[0].mxu0
      %813 = vmatprep.mubr.f32.mxu0 0.0
      %814 = vmatmul.mubr.f32.gmra.mrb[0].mxu0 %v676
      %v815 = vpop.f32.mrb[0].mxu0
      %v816 = vadd.f32 %v623, %v815
      %v817 = vpop.f32.mrb[0].mxu0
      %818 = vmatprep.mubr.f32.mxu0 0.0
      %819 = vmatmul.mubr.f32.gmra.mrb[0].mxu0 %v679
      %v820 = vpop.f32.mrb[0].mxu0
      %v821 = vadd.f32 %v628, %v820
      %v822 = vpop.f32.mrb[0].mxu0
      %823 = vmatprep.mubr.f32.mxu0 0.0
      %824 = vmatmul.mubr.f32.gmra.mrb[0].mxu0 %v682
      %v825 = vpop.f32.mrb[0].mxu0
      %v826 = vadd.f32 %v633, %v825
      %v827 = vpop.f32.mrb[0].mxu0
      %828 = vdwg.mxu0
      %v829 = vsub.f32 0.0, %v751
      %v830 = vsub.f32 0.0, %v756
      %v831 = vsub.f32 0.0, %v761
      %v832 = vsub.f32 0.0, %v766
      %v833 = vsub.f32 0.0, %v771
      %v834 = vsub.f32 0.0, %v776
      %v835 = vsub.f32 0.0, %v781
      %v836 = vsub.f32 0.0, %v786
      %v837 = vmul.f32 %v829, 1.442695
      %v838 = vpow.pop %v837
      %v839 = vmul.f32 %v830, 1.442695
      %v840 = vpow.pop %v839
      %v841 = vmul.f32 %v831, 1.442695
      %v842 = vpow.pop %v841
      %v843 = vmul.f32 %v832, 1.442695
      %v844 = vpow.pop %v843
      %v845 = vmul.f32 %v833, 1.442695
      %v846 = vpow.pop %v845
      %v847 = vmul.f32 %v834, 1.442695
      %v848 = vpow.pop %v847
      %v849 = vmul.f32 %v835, 1.442695
      %v850 = vpow.pop %v849
      %v851 = vmul.f32 %v836, 1.442695
      %v852 = vpow.pop %v851
      %v853 = vadd.f32 %v838, 1.0
      %v854 = vadd.f32 %v840, 1.0
      %v855 = vadd.f32 %v842, 1.0
      %v856 = vadd.f32 %v844, 1.0
      %v857 = vadd.f32 %v846, 1.0
      %v858 = vadd.f32 %v848, 1.0
      %v859 = vadd.f32 %v850, 1.0
      %v860 = vadd.f32 %v852, 1.0
      %v861 = vrcp.pop %v853
      %v862 = vmul.f32 1.0, %v861
      %v863 = vrcp.pop %v854
      %v864 = vmul.f32 1.0, %v863
      %v865 = vrcp.pop %v855
      %v866 = vmul.f32 1.0, %v865
      %v867 = vrcp.pop %v856
      %v868 = vmul.f32 1.0, %v867
      %v869 = vrcp.pop %v857
      %v870 = vmul.f32 1.0, %v869
      %v871 = vrcp.pop %v858
      %v872 = vmul.f32 1.0, %v871
      %v873 = vrcp.pop %v859
      %v874 = vmul.f32 1.0, %v873
      %v875 = vrcp.pop %v860
      %v876 = vmul.f32 1.0, %v875
      %v877 = vsub.f32 0.0, %v791
      %v878 = vsub.f32 0.0, %v796
      %v879 = vsub.f32 0.0, %v801
      %v880 = vsub.f32 0.0, %v806
      %v881 = vsub.f32 0.0, %v811
      %v882 = vsub.f32 0.0, %v816
      %v883 = vsub.f32 0.0, %v821
      %v884 = vsub.f32 0.0, %v826
      %v885 = vmul.f32 %v877, 1.442695
      %v886 = vpow.pop %v885
      %v887 = vmul.f32 %v878, 1.442695
      %v888 = vpow.pop %v887
      %v889 = vmul.f32 %v879, 1.442695
      %v890 = vpow.pop %v889
      %v891 = vmul.f32 %v880, 1.442695
      %v892 = vpow.pop %v891
      %v893 = vmul.f32 %v881, 1.442695
      %v894 = vpow.pop %v893
      %v895 = vmul.f32 %v882, 1.442695
      %v896 = vpow.pop %v895
      %v897 = vmul.f32 %v883, 1.442695
      %v898 = vpow.pop %v897
      %v899 = vmul.f32 %v884, 1.442695
      %v900 = vpow.pop %v899
      %v901 = vadd.f32 %v886, 1.0
      %v902 = vadd.f32 %v888, 1.0
      %v903 = vadd.f32 %v890, 1.0
      %v904 = vadd.f32 %v892, 1.0
      %v905 = vadd.f32 %v894, 1.0
      %v906 = vadd.f32 %v896, 1.0
      %v907 = vadd.f32 %v898, 1.0
      %v908 = vadd.f32 %v900, 1.0
      %v909 = vrcp.pop %v901
      %v910 = vmul.f32 1.0, %v909
      %v911 = vrcp.pop %v902
      %v912 = vmul.f32 1.0, %v911
      %v913 = vrcp.pop %v903
      %v914 = vmul.f32 1.0, %v913
      %v915 = vrcp.pop %v904
      %v916 = vmul.f32 1.0, %v915
      %v917 = vrcp.pop %v905
      %v918 = vmul.f32 1.0, %v917
      %v919 = vrcp.pop %v906
      %v920 = vmul.f32 1.0, %v919
      %v921 = vrcp.pop %v907
      %v922 = vmul.f32 1.0, %v921
      %v923 = vrcp.pop %v908
      %v924 = vmul.f32 1.0, %v923
      %vm925 = vcmask 130048
      %v927 = vsel %vm925, %v862, 0
      %v930 = vsel %vm925, %v864, 0
      %v933 = vsel %vm925, %v866, 0
      %v936 = vsel %vm925, %v868, 0
      %v939 = vsel %vm925, %v870, 0
      %v942 = vsel %vm925, %v872, 0
      %v945 = vsel %vm925, %v874, 0
      %v948 = vsel %vm925, %v876, 0
      %950 = vmatprep.subr.mxu0 %v347
      %951 = vmatpush1.msra.mxu0 %v346
      %952 = vmatprep.subr.mxu0 %v349
      %953 = vmatpush1.msra.mxu0 %v348
      %954 = vmatprep.subr.mxu0 0.0
      %955 = vmatpush1.msra.mxu0 0.0
      %956 = vmatprep.subr.mxu0 0.0
      %957 = vmatpush1.msra.mxu0 0.0
      %958 = vmatprep.subr.mxu0 0.0
      %959 = vmatpush1.msra.mxu0 0.0
      %960 = vmatprep.subr.mxu0 0.0
      %961 = vmatpush1.msra.mxu0 0.0
      %962 = vmatprep.subr.mxu0 0.0
      %963 = vmatpush1.msra.mxu0 0.0
      %964 = vmatprep.subr.mxu0 0.0
      %965 = vmatpush1.msra.mxu0 0.0
      %966 = vmatprep.subr.mxu0 0.0
      %967 = vmatpush1.msra.mxu0 0.0
      %968 = vmatprep.subr.mxu0 0.0
      %969 = vmatpush1.msra.mxu0 0.0
      %970 = vmatprep.subr.mxu0 0.0
      %971 = vmatpush1.msra.mxu0 0.0
      %972 = vmatprep.subr.mxu0 0.0
      %973 = vmatpush1.msra.mxu0 0.0
      %974 = vmatprep.subr.mxu0 0.0
      %975 = vmatpush1.msra.mxu0 0.0
      %976 = vmatprep.subr.mxu0 0.0
      %977 = vmatpush1.msra.mxu0 0.0
      %978 = vmatprep.subr.mxu0 0.0
      %979 = vmatpush1.msra.mxu0 0.0
      %980 = vmatprep.subr.mxu0 0.0
      %981 = vmatpush1.msra.mxu0 0.0
      %982 = vmatprep.subr.mxu0 0.0
      %983 = vmatpush1.msra.mxu0 0.0
      %984 = vmatprep.subr.mxu0 0.0
      %985 = vmatpush1.msra.mxu0 0.0
      %986 = vmatprep.subr.mxu0 0.0
      %987 = vmatpush1.msra.mxu0 0.0
      %988 = vmatprep.subr.mxu0 0.0
      %989 = vmatpush1.msra.mxu0 0.0
      %990 = vmatprep.subr.mxu0 0.0
      %991 = vmatpush1.msra.mxu0 0.0
      %992 = vmatprep.subr.mxu0 0.0
      %993 = vmatpush1.msra.mxu0 0.0
      %994 = vmatprep.subr.mxu0 0.0
      %995 = vmatpush1.msra.mxu0 0.0
      %996 = vmatprep.subr.mxu0 0.0
      %997 = vmatpush1.msra.mxu0 0.0
      %998 = vmatprep.subr.mxu0 0.0
      %999 = vmatpush1.msra.mxu0 0.0
      %1000 = vmatprep.subr.mxu0 0.0
      %1001 = vmatpush1.msra.mxu0 0.0
      %1002 = vmatprep.subr.mxu0 0.0
      %1003 = vmatpush1.msra.mxu0 0.0
      %1004 = vmatprep.subr.mxu0 0.0
      %1005 = vmatpush1.msra.mxu0 0.0
      %1006 = vmatprep.subr.mxu0 0.0
      %1007 = vmatpush1.msra.mxu0 0.0
      %1008 = vmatprep.subr.mxu0 0.0
      %1009 = vmatpush1.msra.mxu0 0.0
      %1010 = vmatprep.subr.mxu0 0.0
      %1011 = vmatpush1.msra.mxu0 0.0
      %1012 = vmatprep.subr.mxu0 0.0
      %1013 = vmatpush1.msra.mxu0 0.0
      %1014 = vmatprep.mubr.f32.mxu0 0.0
      %1015 = vmatmul.mubr.f32.gmra.mrb[0].mxu0 %v927
      %v1016 = vpop.f32.mrb[0].mxu0
      %v1017 = vadd.f32 0.0, %v1016
      %v1018 = vpop.f32.mrb[0].mxu0
      %v1019 = vadd.f32 0.0, %v1018
      %1020 = vmatprep.mubr.f32.mxu0 0.0
      %1021 = vmatmul.mubr.f32.gmra.mrb[0].mxu0 %v930
      %v1022 = vpop.f32.mrb[0].mxu0
      %v1023 = vadd.f32 0.0, %v1022
      %v1024 = vpop.f32.mrb[0].mxu0
      %v1025 = vadd.f32 0.0, %v1024
      %1026 = vmatprep.mubr.f32.mxu0 0.0
      %1027 = vmatmul.mubr.f32.gmra.mrb[0].mxu0 %v933
      %v1028 = vpop.f32.mrb[0].mxu0
      %v1029 = vadd.f32 0.0, %v1028
      %v1030 = vpop.f32.mrb[0].mxu0
      %v1031 = vadd.f32 0.0, %v1030
      %1032 = vmatprep.mubr.f32.mxu0 0.0
      %1033 = vmatmul.mubr.f32.gmra.mrb[0].mxu0 %v936
      %v1034 = vpop.f32.mrb[0].mxu0
      %v1035 = vadd.f32 0.0, %v1034
      %v1036 = vpop.f32.mrb[0].mxu0
      %v1037 = vadd.f32 0.0, %v1036
      %1038 = vmatprep.mubr.f32.mxu0 0.0
      %1039 = vmatmul.mubr.f32.gmra.mrb[0].mxu0 %v939
      %v1040 = vpop.f32.mrb[0].mxu0
      %v1041 = vadd.f32 0.0, %v1040
      %v1042 = vpop.f32.mrb[0].mxu0
      %v1043 = vadd.f32 0.0, %v1042
      %1044 = vmatprep.mubr.f32.mxu0 0.0
      %1045 = vmatmul.mubr.f32.gmra.mrb[0].mxu0 %v942
      %v1046 = vpop.f32.mrb[0].mxu0
      %v1047 = vadd.f32 0.0, %v1046
      %v1048 = vpop.f32.mrb[0].mxu0
      %v1049 = vadd.f32 0.0, %v1048
      %1050 = vmatprep.mubr.f32.mxu0 0.0
      %1051 = vmatmul.mubr.f32.gmra.mrb[0].mxu0 %v945
      %v1052 = vpop.f32.mrb[0].mxu0
      %v1053 = vadd.f32 0.0, %v1052
      %v1054 = vpop.f32.mrb[0].mxu0
      %v1055 = vadd.f32 0.0, %v1054
      %1056 = vmatprep.mubr.f32.mxu0 0.0
      %1057 = vmatmul.mubr.f32.gmra.mrb[0].mxu0 %v948
      %v1058 = vpop.f32.mrb[0].mxu0
      %v1059 = vadd.f32 0.0, %v1058
      %v1060 = vpop.f32.mrb[0].mxu0
      %v1061 = vadd.f32 0.0, %v1060
      %1062 = vdwg.mxu0
      %1071 = vrot.lane.b32.xlu0 %v910, 112
      %v1072 = vpop.permute.xlu0 %1071
      %1073 = vrot.lane.b32.xlu0 %v912, 112
      %v1074 = vpop.permute.xlu0 %1073
      %1075 = vrot.lane.b32.xlu0 %v914, 112
      %v1076 = vpop.permute.xlu0 %1075
      %1077 = vrot.lane.b32.xlu0 %v916, 112
      %v1078 = vpop.permute.xlu0 %1077
      %1079 = vrot.lane.b32.xlu0 %v918, 112
      %v1080 = vpop.permute.xlu0 %1079
      %1081 = vrot.lane.b32.xlu0 %v920, 112
      %v1082 = vpop.permute.xlu0 %1081
      %1083 = vrot.lane.b32.xlu0 %v922, 112
      %v1084 = vpop.permute.xlu0 %1083
      %1085 = vrot.lane.b32.xlu0 %v924, 112
      %v1086 = vpop.permute.xlu0 %1085
      %v1087 = vsel %vm925, %v1072, 0
      %v1089 = vsel %vm925, %v1074, 0
      %v1091 = vsel %vm925, %v1076, 0
      %v1093 = vsel %vm925, %v1078, 0
      %v1095 = vsel %vm925, %v1080, 0
      %v1097 = vsel %vm925, %v1082, 0
      %v1099 = vsel %vm925, %v1084, 0
      %v1101 = vsel %vm925, %v1086, 0
      %1103 = vmatprep.subr.mxu0 %v351
      %1104 = vmatpush1.msra.mxu0 %v350
      %1105 = vmatprep.subr.mxu0 %v353
      %1106 = vmatpush1.msra.mxu0 %v352
      %1107 = vmatprep.subr.mxu0 0.0
      %1108 = vmatpush1.msra.mxu0 0.0
      %1109 = vmatprep.subr.mxu0 0.0
      %1110 = vmatpush1.msra.mxu0 0.0
      %1111 = vmatprep.subr.mxu0 0.0
      %1112 = vmatpush1.msra.mxu0 0.0
      %1113 = vmatprep.subr.mxu0 0.0
      %1114 = vmatpush1.msra.mxu0 0.0
      %1115 = vmatprep.subr.mxu0 0.0
      %1116 = vmatpush1.msra.mxu0 0.0
      %1117 = vmatprep.subr.mxu0 0.0
      %1118 = vmatpush1.msra.mxu0 0.0
      %1119 = vmatprep.subr.mxu0 0.0
      %1120 = vmatpush1.msra.mxu0 0.0
      %1121 = vmatprep.subr.mxu0 0.0
      %1122 = vmatpush1.msra.mxu0 0.0
      %1123 = vmatprep.subr.mxu0 0.0
      %1124 = vmatpush1.msra.mxu0 0.0
      %1125 = vmatprep.subr.mxu0 0.0
      %1126 = vmatpush1.msra.mxu0 0.0
      %1127 = vmatprep.subr.mxu0 0.0
      %1128 = vmatpush1.msra.mxu0 0.0
      %1129 = vmatprep.subr.mxu0 0.0
      %1130 = vmatpush1.msra.mxu0 0.0
      %1131 = vmatprep.subr.mxu0 0.0
      %1132 = vmatpush1.msra.mxu0 0.0
      %1133 = vmatprep.subr.mxu0 0.0
      %1134 = vmatpush1.msra.mxu0 0.0
      %1135 = vmatprep.subr.mxu0 0.0
      %1136 = vmatpush1.msra.mxu0 0.0
      %1137 = vmatprep.subr.mxu0 0.0
      %1138 = vmatpush1.msra.mxu0 0.0
      %1139 = vmatprep.subr.mxu0 0.0
      %1140 = vmatpush1.msra.mxu0 0.0
      %1141 = vmatprep.subr.mxu0 0.0
      %1142 = vmatpush1.msra.mxu0 0.0
      %1143 = vmatprep.subr.mxu0 0.0
      %1144 = vmatpush1.msra.mxu0 0.0
      %1145 = vmatprep.subr.mxu0 0.0
      %1146 = vmatpush1.msra.mxu0 0.0
      %1147 = vmatprep.subr.mxu0 0.0
      %1148 = vmatpush1.msra.mxu0 0.0
      %1149 = vmatprep.subr.mxu0 0.0
      %1150 = vmatpush1.msra.mxu0 0.0
      %1151 = vmatprep.subr.mxu0 0.0
      %1152 = vmatpush1.msra.mxu0 0.0
      %1153 = vmatprep.subr.mxu0 0.0
      %1154 = vmatpush1.msra.mxu0 0.0
      %1155 = vmatprep.subr.mxu0 0.0
      %1156 = vmatpush1.msra.mxu0 0.0
      %1157 = vmatprep.subr.mxu0 0.0
      %1158 = vmatpush1.msra.mxu0 0.0
      %1159 = vmatprep.subr.mxu0 0.0
      %1160 = vmatpush1.msra.mxu0 0.0
      %1161 = vmatprep.subr.mxu0 0.0
      %1162 = vmatpush1.msra.mxu0 0.0
      %1163 = vmatprep.subr.mxu0 0.0
      %1164 = vmatpush1.msra.mxu0 0.0
      %1165 = vmatprep.subr.mxu0 0.0
      %1166 = vmatpush1.msra.mxu0 0.0
      %1167 = vmatprep.mubr.f32.mxu0 0.0
      %1168 = vmatmul.mubr.f32.gmra.mrb[0].mxu0 %v1087
      %v1169 = vpop.f32.mrb[0].mxu0
      %v1170 = vadd.f32 0.0, %v1169
      %v1171 = vpop.f32.mrb[0].mxu0
      %v1172 = vadd.f32 0.0, %v1171
      %1173 = vmatprep.mubr.f32.mxu0 0.0
      %1174 = vmatmul.mubr.f32.gmra.mrb[0].mxu0 %v1089
      %v1175 = vpop.f32.mrb[0].mxu0
      %v1176 = vadd.f32 0.0, %v1175
      %v1177 = vpop.f32.mrb[0].mxu0
      %v1178 = vadd.f32 0.0, %v1177
      %1179 = vmatprep.mubr.f32.mxu0 0.0
      %1180 = vmatmul.mubr.f32.gmra.mrb[0].mxu0 %v1091
      %v1181 = vpop.f32.mrb[0].mxu0
      %v1182 = vadd.f32 0.0, %v1181
      %v1183 = vpop.f32.mrb[0].mxu0
      %v1184 = vadd.f32 0.0, %v1183
      %1185 = vmatprep.mubr.f32.mxu0 0.0
      %1186 = vmatmul.mubr.f32.gmra.mrb[0].mxu0 %v1093
      %v1187 = vpop.f32.mrb[0].mxu0
      %v1188 = vadd.f32 0.0, %v1187
      %v1189 = vpop.f32.mrb[0].mxu0
      %v1190 = vadd.f32 0.0, %v1189
      %1191 = vmatprep.mubr.f32.mxu0 0.0
      %1192 = vmatmul.mubr.f32.gmra.mrb[0].mxu0 %v1095
      %v1193 = vpop.f32.mrb[0].mxu0
      %v1194 = vadd.f32 0.0, %v1193
      %v1195 = vpop.f32.mrb[0].mxu0
      %v1196 = vadd.f32 0.0, %v1195
      %1197 = vmatprep.mubr.f32.mxu0 0.0
      %1198 = vmatmul.mubr.f32.gmra.mrb[0].mxu0 %v1097
      %v1199 = vpop.f32.mrb[0].mxu0
      %v1200 = vadd.f32 0.0, %v1199
      %v1201 = vpop.f32.mrb[0].mxu0
      %v1202 = vadd.f32 0.0, %v1201
      %1203 = vmatprep.mubr.f32.mxu0 0.0
      %1204 = vmatmul.mubr.f32.gmra.mrb[0].mxu0 %v1099
      %v1205 = vpop.f32.mrb[0].mxu0
      %v1206 = vadd.f32 0.0, %v1205
      %v1207 = vpop.f32.mrb[0].mxu0
      %v1208 = vadd.f32 0.0, %v1207
      %1209 = vmatprep.mubr.f32.mxu0 0.0
      %1210 = vmatmul.mubr.f32.gmra.mrb[0].mxu0 %v1101
      %v1211 = vpop.f32.mrb[0].mxu0
      %v1212 = vadd.f32 0.0, %v1211
      %v1213 = vpop.f32.mrb[0].mxu0
      %v1214 = vadd.f32 0.0, %v1213
      %1215 = vdwg.mxu0
      %v1216 = vmul.f32 %v388, %v1170
      %v1217 = vmul.f32 %v389, %v1172
      %v1218 = vmul.f32 %v390, %v1176
      %v1219 = vmul.f32 %v391, %v1178
      %v1220 = vmul.f32 %v392, %v1182
      %v1221 = vmul.f32 %v393, %v1184
      %v1222 = vmul.f32 %v394, %v1188
      %v1223 = vmul.f32 %v395, %v1190
      %v1224 = vmul.f32 %v396, %v1194
      %v1225 = vmul.f32 %v397, %v1196
      %v1226 = vmul.f32 %v398, %v1200
      %v1227 = vmul.f32 %v399, %v1202
      %v1228 = vmul.f32 %v400, %v1206
      %v1229 = vmul.f32 %v401, %v1208
      %v1230 = vmul.f32 %v402, %v1212
      %v1231 = vmul.f32 %v403, %v1214
      %v1232 = vmul.f32 %v1216, %v1017
      %v1233 = vmul.f32 %v1217, %v1019
      %v1234 = vmul.f32 %v1218, %v1023
      %v1235 = vmul.f32 %v1219, %v1025
      %v1236 = vmul.f32 %v1220, %v1029
      %v1237 = vmul.f32 %v1221, %v1031
      %v1238 = vmul.f32 %v1222, %v1035
      %v1239 = vmul.f32 %v1223, %v1037
      %v1240 = vmul.f32 %v1224, %v1041
      %v1241 = vmul.f32 %v1225, %v1043
      %v1242 = vmul.f32 %v1226, %v1047
      %v1243 = vmul.f32 %v1227, %v1049
      %v1244 = vmul.f32 %v1228, %v1053
      %v1245 = vmul.f32 %v1229, %v1055
      %v1246 = vmul.f32 %v1230, %v1059
      %v1247 = vmul.f32 %v1231, %v1061
      %1248 = vst [vmem:[%s312] sm:$0xff] %v1232
      %1249 = vst [vmem:[%s312 + $0x8] sm:$0xff] %v1233
      %1250 = vst [vmem:[%s312 + $0x10] sm:$0xff] %v1234
      %1251 = vst [vmem:[%s312 + $0x18] sm:$0xff] %v1235
      %1252 = vst [vmem:[%s312 + $0x20] sm:$0xff] %v1236
      %1253 = vst [vmem:[%s312 + $0x28] sm:$0xff] %v1237
      %1254 = vst [vmem:[%s312 + $0x30] sm:$0xff] %v1238
      %1255 = vst [vmem:[%s312 + $0x38] sm:$0xff] %v1239
      %1256 = vst [vmem:[%s312 + $0x40] sm:$0xff] %v1240
      %1257 = vst [vmem:[%s312 + $0x48] sm:$0xff] %v1241
      %1258 = vst [vmem:[%s312 + $0x50] sm:$0xff] %v1242
      %1259 = vst [vmem:[%s312 + $0x58] sm:$0xff] %v1243
      %1260 = vst [vmem:[%s312 + $0x60] sm:$0xff] %v1244
      %1261 = vst [vmem:[%s312 + $0x68] sm:$0xff] %v1245
      %1262 = vst [vmem:[%s312 + $0x70] sm:$0xff] %v1246
      %1263 = vst [vmem:[%s312 + $0x78] sm:$0xff] %v1247
      %s1264 = scalar_lea.vmem %s305, 128
      %v1265 = vld [vmem:[%s1264] sm:$0xff]
      %v1266 = vld [vmem:[%s1264 + $0x8] sm:$0xff]
      %v1267 = vld [vmem:[%s1264 + $0x10] sm:$0xff]
      %v1268 = vld [vmem:[%s1264 + $0x18] sm:$0xff]
      %v1269 = vld [vmem:[%s1264 + $0x20] sm:$0xff]
      %v1270 = vld [vmem:[%s1264 + $0x28] sm:$0xff]
      %v1271 = vld [vmem:[%s1264 + $0x30] sm:$0xff]
      %v1272 = vld [vmem:[%s1264 + $0x38] sm:$0xff]
      %v1273 = vld [vmem:[%s1264 + $0x40] sm:$0xff]
      %v1274 = vld [vmem:[%s1264 + $0x48] sm:$0xff]
      %v1275 = vld [vmem:[%s1264 + $0x50] sm:$0xff]
      %v1276 = vld [vmem:[%s1264 + $0x58] sm:$0xff]
      %v1277 = vld [vmem:[%s1264 + $0x60] sm:$0xff]
      %v1278 = vld [vmem:[%s1264 + $0x68] sm:$0xff]
      %v1279 = vld [vmem:[%s1264 + $0x70] sm:$0xff]
      %v1280 = vld [vmem:[%s1264 + $0x78] sm:$0xff]
      %1281 = vmatprep.subr.mxu0 %v1266
      %1282 = vmatpush1.msra.mxu0 %v1265
      %1283 = vmatprep.subr.mxu0 %v1268
      %1284 = vmatpush1.msra.mxu0 %v1267
      %1285 = vmatprep.subr.mxu0 %v1270
      %1286 = vmatpush1.msra.mxu0 %v1269
      %1287 = vmatprep.subr.mxu0 %v1272
      %1288 = vmatpush1.msra.mxu0 %v1271
      %1289 = vmatprep.subr.mxu0 %v1274
      %1290 = vmatpush1.msra.mxu0 %v1273
      %1291 = vmatprep.subr.mxu0 %v1276
      %1292 = vmatpush1.msra.mxu0 %v1275
      %1293 = vmatprep.subr.mxu0 %v1278
      %1294 = vmatpush1.msra.mxu0 %v1277
      %1295 = vmatprep.subr.mxu0 %v1280
      %1296 = vmatpush1.msra.mxu0 %v1279
      %1297 = vmatprep.subr.mxu0 0.0
      %1298 = vmatpush1.msra.mxu0 0.0
      %1299 = vmatprep.subr.mxu0 0.0
      %1300 = vmatpush1.msra.mxu0 0.0
      %1301 = vmatprep.subr.mxu0 0.0
      %1302 = vmatpush1.msra.mxu0 0.0
      %1303 = vmatprep.subr.mxu0 0.0
      %1304 = vmatpush1.msra.mxu0 0.0
      %1305 = vmatprep.subr.mxu0 0.0
      %1306 = vmatpush1.msra.mxu0 0.0
      %1307 = vmatprep.subr.mxu0 0.0
      %1308 = vmatpush1.msra.mxu0 0.0
      %1309 = vmatprep.subr.mxu0 0.0
      %1310 = vmatpush1.msra.mxu0 0.0
      %1311 = vmatprep.subr.mxu0 0.0
      %1312 = vmatpush1.msra.mxu0 0.0
      %1313 = vmatprep.subr.mxu0 0.0
      %1314 = vmatpush1.msra.mxu0 0.0
      %1315 = vmatprep.subr.mxu0 0.0
      %1316 = vmatpush1.msra.mxu0 0.0
      %1317 = vmatprep.subr.mxu0 0.0
      %1318 = vmatpush1.msra.mxu0 0.0
      %1319 = vmatprep.subr.mxu0 0.0
      %1320 = vmatpush1.msra.mxu0 0.0
      %1321 = vmatprep.subr.mxu0 0.0
      %1322 = vmatpush1.msra.mxu0 0.0
      %1323 = vmatprep.subr.mxu0 0.0
      %1324 = vmatpush1.msra.mxu0 0.0
      %1325 = vmatprep.subr.mxu0 0.0
      %1326 = vmatpush1.msra.mxu0 0.0
      %1327 = vmatprep.subr.mxu0 0.0
      %1328 = vmatpush1.msra.mxu0 0.0
      %1329 = vmatprep.subr.mxu0 0.0
      %1330 = vmatpush1.msra.mxu0 0.0
      %1331 = vmatprep.subr.mxu0 0.0
      %1332 = vmatpush1.msra.mxu0 0.0
      %1333 = vmatprep.subr.mxu0 0.0
      %1334 = vmatpush1.msra.mxu0 0.0
      %1335 = vmatprep.subr.mxu0 0.0
      %1336 = vmatpush1.msra.mxu0 0.0
      %1337 = vmatprep.subr.mxu0 0.0
      %1338 = vmatpush1.msra.mxu0 0.0
      %1339 = vmatprep.subr.mxu0 0.0
      %1340 = vmatpush1.msra.mxu0 0.0
      %1341 = vmatprep.subr.mxu0 0.0
      %1342 = vmatpush1.msra.mxu0 0.0
      %1343 = vmatprep.subr.mxu0 0.0
      %1344 = vmatpush1.msra.mxu0 0.0
      %1345 = vmatprep.mubr.f32.mxu0 0.0
      %1346 = vmatmul.mubr.f32.gmra.mrb[0].mxu0 %v406
      %v1347 = vpop.f32.mrb[0].mxu0
      %v1348 = vadd.f32 0.0, %v1347
      %v1349 = vpop.f32.mrb[0].mxu0
      %v1350 = vadd.f32 0.0, %v1349
      %1351 = vdwg.mxu0
      %1352 = vmatprep.subr.mxu0 0.0
      %1353 = vmatpush1.msra.mxu0 %v314
      %1354 = vmatprep.subr.mxu0 0.0
      %1355 = vmatpush1.msra.mxu0 %v315
      %1356 = vmatprep.subr.mxu0 0.0
      %1357 = vmatpush1.msra.mxu0 %v316
      %1358 = vmatprep.subr.mxu0 0.0
      %1359 = vmatpush1.msra.mxu0 %v317
      %1360 = vmatprep.subr.mxu0 0.0
      %1361 = vmatpush1.msra.mxu0 %v318
      %1362 = vmatprep.subr.mxu0 0.0
      %1363 = vmatpush1.msra.mxu0 %v319
      %1364 = vmatprep.subr.mxu0 0.0
      %1365 = vmatpush1.msra.mxu0 %v320
      %1366 = vmatprep.subr.mxu0 0.0
      %1367 = vmatpush1.msra.mxu0 %v321
      %1368 = vmatprep.subr.mxu0 0.0
      %1369 = vmatpush1.msra.mxu0 %v322
      %1370 = vmatprep.subr.mxu0 0.0
      %1371 = vmatpush1.msra.mxu0 %v323
      %1372 = vmatprep.subr.mxu0 0.0
      %1373 = vmatpush1.msra.mxu0 %v324
      %1374 = vmatprep.subr.mxu0 0.0
      %1375 = vmatpush1.msra.mxu0 %v325
      %1376 = vmatprep.subr.mxu0 0.0
      %1377 = vmatpush1.msra.mxu0 %v326
      %1378 = vmatprep.subr.mxu0 0.0
      %1379 = vmatpush1.msra.mxu0 %v327
      %1380 = vmatprep.subr.mxu0 0.0
      %1381 = vmatpush1.msra.mxu0 %v328
      %1382 = vmatprep.subr.mxu0 0.0
      %1383 = vmatpush1.msra.mxu0 %v329
      %1384 = vmatprep.subr.mxu0 0.0
      %1385 = vmatpush1.msra.mxu0 %v330
      %1386 = vmatprep.subr.mxu0 0.0
      %1387 = vmatpush1.msra.mxu0 %v331
      %1388 = vmatprep.subr.mxu0 0.0
      %1389 = vmatpush1.msra.mxu0 %v332
      %1390 = vmatprep.subr.mxu0 0.0
      %1391 = vmatpush1.msra.mxu0 %v333
      %1392 = vmatprep.subr.mxu0 0.0
      %1393 = vmatpush1.msra.mxu0 %v334
      %1394 = vmatprep.subr.mxu0 0.0
      %1395 = vmatpush1.msra.mxu0 %v335
      %1396 = vmatprep.subr.mxu0 0.0
      %1397 = vmatpush1.msra.mxu0 %v336
      %1398 = vmatprep.subr.mxu0 0.0
      %1399 = vmatpush1.msra.mxu0 %v337
      %1400 = vmatprep.subr.mxu0 0.0
      %1401 = vmatpush1.msra.mxu0 %v338
      %1402 = vmatprep.subr.mxu0 0.0
      %1403 = vmatpush1.msra.mxu0 %v339
      %1404 = vmatprep.subr.mxu0 0.0
      %1405 = vmatpush1.msra.mxu0 %v340
      %1406 = vmatprep.subr.mxu0 0.0
      %1407 = vmatpush1.msra.mxu0 %v341
      %1408 = vmatprep.subr.mxu0 0.0
      %1409 = vmatpush1.msra.mxu0 %v342
      %1410 = vmatprep.subr.mxu0 0.0
      %1411 = vmatpush1.msra.mxu0 %v343
      %1412 = vmatprep.subr.mxu0 0.0
      %1413 = vmatpush1.msra.mxu0 %v344
      %1414 = vmatprep.subr.mxu0 0.0
      %1415 = vmatpush1.msra.mxu0 %v345
      %1416 = vmatprep.mubr.f32.mxu0 %v1350
      %1417 = vmatmul.mubr.f32.gmra.mrb[0].mxu0 %v1348
      %v1418 = vpop.f32.mrb[0].mxu0
      %v1419 = vadd.f32 %v482, %v1418
      %v1420 = vpop.f32.mrb[0].mxu0
      %1421 = vdwg.mxu0
      %v1422 = vmax.f32 %v1419, 0.0
      %1423 = vmatprep.subr.mxu0 0.0
      %1424 = vmatpush1.msra.mxu0 %v1422
      %1425 = vmatprep.subr.mxu0 0.0
      %1426 = vmatpush1.msra.mxu0 0.0
      %1427 = vmatprep.subr.mxu0 0.0
      %1428 = vmatpush1.msra.mxu0 0.0
      %1429 = vmatprep.subr.mxu0 0.0
      %1430 = vmatpush1.msra.mxu0 0.0
      %1431 = vmatprep.subr.mxu0 0.0
      %1432 = vmatpush1.msra.mxu0 0.0
      %1433 = vmatprep.subr.mxu0 0.0
      %1434 = vmatpush1.msra.mxu0 0.0
      %1435 = vmatprep.subr.mxu0 0.0
      %1436 = vmatpush1.msra.mxu0 0.0
      %1437 = vmatprep.subr.mxu0 0.0
      %1438 = vmatpush1.msra.mxu0 0.0
      %1439 = vmatprep.subr.mxu0 0.0
      %1440 = vmatpush1.msra.mxu0 0.0
      %1441 = vmatprep.subr.mxu0 0.0
      %1442 = vmatpush1.msra.mxu0 0.0
      %1443 = vmatprep.subr.mxu0 0.0
      %1444 = vmatpush1.msra.mxu0 0.0
      %1445 = vmatprep.subr.mxu0 0.0
      %1446 = vmatpush1.msra.mxu0 0.0
      %1447 = vmatprep.subr.mxu0 0.0
      %1448 = vmatpush1.msra.mxu0 0.0
      %1449 = vmatprep.subr.mxu0 0.0
      %1450 = vmatpush1.msra.mxu0 0.0
      %1451 = vmatprep.subr.mxu0 0.0
      %1452 = vmatpush1.msra.mxu0 0.0
      %1453 = vmatprep.subr.mxu0 0.0
      %1454 = vmatpush1.msra.mxu0 0.0
      %1455 = vmatprep.subr.mxu0 0.0
      %1456 = vmatpush1.msra.mxu0 0.0
      %1457 = vmatprep.subr.mxu0 0.0
      %1458 = vmatpush1.msra.mxu0 0.0
      %1459 = vmatprep.subr.mxu0 0.0
      %1460 = vmatpush1.msra.mxu0 0.0
      %1461 = vmatprep.subr.mxu0 0.0
      %1462 = vmatpush1.msra.mxu0 0.0
      %1463 = vmatprep.subr.mxu0 0.0
      %1464 = vmatpush1.msra.mxu0 0.0
      %1465 = vmatprep.subr.mxu0 0.0
      %1466 = vmatpush1.msra.mxu0 0.0
      %1467 = vmatprep.subr.mxu0 0.0
      %1468 = vmatpush1.msra.mxu0 0.0
      %1469 = vmatprep.subr.mxu0 0.0
      %1470 = vmatpush1.msra.mxu0 0.0
      %1471 = vmatprep.subr.mxu0 0.0
      %1472 = vmatpush1.msra.mxu0 0.0
      %1473 = vmatprep.subr.mxu0 0.0
      %1474 = vmatpush1.msra.mxu0 0.0
      %1475 = vmatprep.subr.mxu0 0.0
      %1476 = vmatpush1.msra.mxu0 0.0
      %1477 = vmatprep.subr.mxu0 0.0
      %1478 = vmatpush1.msra.mxu0 0.0
      %1479 = vmatprep.subr.mxu0 0.0
      %1480 = vmatpush1.msra.mxu0 0.0
      %1481 = vmatprep.subr.mxu0 0.0
      %1482 = vmatpush1.msra.mxu0 0.0
      %1483 = vmatprep.subr.mxu0 0.0
      %1484 = vmatpush1.msra.mxu0 0.0
      %1485 = vmatprep.subr.mxu0 0.0
      %1486 = vmatpush1.msra.mxu0 0.0
      %1487 = vmatprep.mubr.f32.mxu0 0.0
      %1488 = vmatmul.mubr.f32.gmra.mrb[0].mxu0 %v637
      %v1489 = vpop.f32.mrb[0].mxu0
      %v1490 = vadd.f32 %v558, %v1489
      %v1491 = vpop.f32.mrb[0].mxu0
      %1492 = vmatprep.mubr.f32.mxu0 0.0
      %1493 = vmatmul.mubr.f32.gmra.mrb[0].mxu0 %v640
      %v1494 = vpop.f32.mrb[0].mxu0
      %v1495 = vadd.f32 %v563, %v1494
      %v1496 = vpop.f32.mrb[0].mxu0
      %1497 = vmatprep.mubr.f32.mxu0 0.0
      %1498 = vmatmul.mubr.f32.gmra.mrb[0].mxu0 %v643
      %v1499 = vpop.f32.mrb[0].mxu0
      %v1500 = vadd.f32 %v568, %v1499
      %v1501 = vpop.f32.mrb[0].mxu0
      %1502 = vmatprep.mubr.f32.mxu0 0.0
      %1503 = vmatmul.mubr.f32.gmra.mrb[0].mxu0 %v646
      %v1504 = vpop.f32.mrb[0].mxu0
      %v1505 = vadd.f32 %v573, %v1504
      %v1506 = vpop.f32.mrb[0].mxu0
      %1507 = vmatprep.mubr.f32.mxu0 0.0
      %1508 = vmatmul.mubr.f32.gmra.mrb[0].mxu0 %v649
      %v1509 = vpop.f32.mrb[0].mxu0
      %v1510 = vadd.f32 %v578, %v1509
      %v1511 = vpop.f32.mrb[0].mxu0
      %1512 = vmatprep.mubr.f32.mxu0 0.0
      %1513 = vmatmul.mubr.f32.gmra.mrb[0].mxu0 %v652
      %v1514 = vpop.f32.mrb[0].mxu0
      %v1515 = vadd.f32 %v583, %v1514
      %v1516 = vpop.f32.mrb[0].mxu0
      %1517 = vmatprep.mubr.f32.mxu0 0.0
      %1518 = vmatmul.mubr.f32.gmra.mrb[0].mxu0 %v655
      %v1519 = vpop.f32.mrb[0].mxu0
      %v1520 = vadd.f32 %v588, %v1519
      %v1521 = vpop.f32.mrb[0].mxu0
      %1522 = vmatprep.mubr.f32.mxu0 0.0
      %1523 = vmatmul.mubr.f32.gmra.mrb[0].mxu0 %v658
      %v1524 = vpop.f32.mrb[0].mxu0
      %v1525 = vadd.f32 %v593, %v1524
      %v1526 = vpop.f32.mrb[0].mxu0
      %1527 = vmatprep.mubr.f32.mxu0 0.0
      %1528 = vmatmul.mubr.f32.gmra.mrb[0].mxu0 %v661
      %v1529 = vpop.f32.mrb[0].mxu0
      %v1530 = vadd.f32 %v598, %v1529
      %v1531 = vpop.f32.mrb[0].mxu0
      %1532 = vmatprep.mubr.f32.mxu0 0.0
      %1533 = vmatmul.mubr.f32.gmra.mrb[0].mxu0 %v664
      %v1534 = vpop.f32.mrb[0].mxu0
      %v1535 = vadd.f32 %v603, %v1534
      %v1536 = vpop.f32.mrb[0].mxu0
      %1537 = vmatprep.mubr.f32.mxu0 0.0
      %1538 = vmatmul.mubr.f32.gmra.mrb[0].mxu0 %v667
      %v1539 = vpop.f32.mrb[0].mxu0
      %v1540 = vadd.f32 %v608, %v1539
      %v1541 = vpop.f32.mrb[0].mxu0
      %1542 = vmatprep.mubr.f32.mxu0 0.0
      %1543 = vmatmul.mubr.f32.gmra.mrb[0].mxu0 %v670
      %v1544 = vpop.f32.mrb[0].mxu0
      %v1545 = vadd.f32 %v613, %v1544
      %v1546 = vpop.f32.mrb[0].mxu0
      %1547 = vmatprep.mubr.f32.mxu0 0.0
      %1548 = vmatmul.mubr.f32.gmra.mrb[0].mxu0 %v673
      %v1549 = vpop.f32.mrb[0].mxu0
      %v1550 = vadd.f32 %v618, %v1549
      %v1551 = vpop.f32.mrb[0].mxu0
      %1552 = vmatprep.mubr.f32.mxu0 0.0
      %1553 = vmatmul.mubr.f32.gmra.mrb[0].mxu0 %v676
      %v1554 = vpop.f32.mrb[0].mxu0
      %v1555 = vadd.f32 %v623, %v1554
      %v1556 = vpop.f32.mrb[0].mxu0
      %1557 = vmatprep.mubr.f32.mxu0 0.0
      %1558 = vmatmul.mubr.f32.gmra.mrb[0].mxu0 %v679
      %v1559 = vpop.f32.mrb[0].mxu0
      %v1560 = vadd.f32 %v628, %v1559
      %v1561 = vpop.f32.mrb[0].mxu0
      %1562 = vmatprep.mubr.f32.mxu0 0.0
      %1563 = vmatmul.mubr.f32.gmra.mrb[0].mxu0 %v682
      %v1564 = vpop.f32.mrb[0].mxu0
      %v1565 = vadd.f32 %v633, %v1564
      %v1566 = vpop.f32.mrb[0].mxu0
      %1567 = vdwg.mxu0
      %v1568 = vsub.f32 0.0, %v1490
      %v1569 = vsub.f32 0.0, %v1495
      %v1570 = vsub.f32 0.0, %v1500
      %v1571 = vsub.f32 0.0, %v1505
      %v1572 = vsub.f32 0.0, %v1510
      %v1573 = vsub.f32 0.0, %v1515
      %v1574 = vsub.f32 0.0, %v1520
      %v1575 = vsub.f32 0.0, %v1525
      %v1576 = vmul.f32 %v1568, 1.442695
      %v1577 = vpow.pop %v1576
      %v1578 = vmul.f32 %v1569, 1.442695
      %v1579 = vpow.pop %v1578
      %v1580 = vmul.f32 %v1570, 1.442695
      %v1581 = vpow.pop %v1580
      %v1582 = vmul.f32 %v1571, 1.442695
      %v1583 = vpow.pop %v1582
      %v1584 = vmul.f32 %v1572, 1.442695
      %v1585 = vpow.pop %v1584
      %v1586 = vmul.f32 %v1573, 1.442695
      %v1587 = vpow.pop %v1586
      %v1588 = vmul.f32 %v1574, 1.442695
      %v1589 = vpow.pop %v1588
      %v1590 = vmul.f32 %v1575, 1.442695
      %v1591 = vpow.pop %v1590
      %v1592 = vadd.f32 %v1577, 1.0
      %v1593 = vadd.f32 %v1579, 1.0
      %v1594 = vadd.f32 %v1581, 1.0
      %v1595 = vadd.f32 %v1583, 1.0
      %v1596 = vadd.f32 %v1585, 1.0
      %v1597 = vadd.f32 %v1587, 1.0
      %v1598 = vadd.f32 %v1589, 1.0
      %v1599 = vadd.f32 %v1591, 1.0
      %v1600 = vrcp.pop %v1592
      %v1601 = vmul.f32 1.0, %v1600
      %v1602 = vrcp.pop %v1593
      %v1603 = vmul.f32 1.0, %v1602
      %v1604 = vrcp.pop %v1594
      %v1605 = vmul.f32 1.0, %v1604
      %v1606 = vrcp.pop %v1595
      %v1607 = vmul.f32 1.0, %v1606
      %v1608 = vrcp.pop %v1596
      %v1609 = vmul.f32 1.0, %v1608
      %v1610 = vrcp.pop %v1597
      %v1611 = vmul.f32 1.0, %v1610
      %v1612 = vrcp.pop %v1598
      %v1613 = vmul.f32 1.0, %v1612
      %v1614 = vrcp.pop %v1599
      %v1615 = vmul.f32 1.0, %v1614
      %v1616 = vsub.f32 0.0, %v1530
      %v1617 = vsub.f32 0.0, %v1535
      %v1618 = vsub.f32 0.0, %v1540
      %v1619 = vsub.f32 0.0, %v1545
      %v1620 = vsub.f32 0.0, %v1550
      %v1621 = vsub.f32 0.0, %v1555
      %v1622 = vsub.f32 0.0, %v1560
      %v1623 = vsub.f32 0.0, %v1565
      %v1624 = vmul.f32 %v1616, 1.442695
      %v1625 = vpow.pop %v1624
      %v1626 = vmul.f32 %v1617, 1.442695
      %v1627 = vpow.pop %v1626
      %v1628 = vmul.f32 %v1618, 1.442695
      %v1629 = vpow.pop %v1628
      %v1630 = vmul.f32 %v1619, 1.442695
      %v1631 = vpow.pop %v1630
      %v1632 = vmul.f32 %v1620, 1.442695
      %v1633 = vpow.pop %v1632
      %v1634 = vmul.f32 %v1621, 1.442695
      %v1635 = vpow.pop %v1634
      %v1636 = vmul.f32 %v1622, 1.442695
      %v1637 = vpow.pop %v1636
      %v1638 = vmul.f32 %v1623, 1.442695
      %v1639 = vpow.pop %v1638
      %v1640 = vadd.f32 %v1625, 1.0
      %v1641 = vadd.f32 %v1627, 1.0
      %v1642 = vadd.f32 %v1629, 1.0
      %v1643 = vadd.f32 %v1631, 1.0
      %v1644 = vadd.f32 %v1633, 1.0
      %v1645 = vadd.f32 %v1635, 1.0
      %v1646 = vadd.f32 %v1637, 1.0
      %v1647 = vadd.f32 %v1639, 1.0
      %v1648 = vrcp.pop %v1640
      %v1649 = vmul.f32 1.0, %v1648
      %v1650 = vrcp.pop %v1641
      %v1651 = vmul.f32 1.0, %v1650
      %v1652 = vrcp.pop %v1642
      %v1653 = vmul.f32 1.0, %v1652
      %v1654 = vrcp.pop %v1643
      %v1655 = vmul.f32 1.0, %v1654
      %v1656 = vrcp.pop %v1644
      %v1657 = vmul.f32 1.0, %v1656
      %v1658 = vrcp.pop %v1645
      %v1659 = vmul.f32 1.0, %v1658
      %v1660 = vrcp.pop %v1646
      %v1661 = vmul.f32 1.0, %v1660
      %v1662 = vrcp.pop %v1647
      %v1663 = vmul.f32 1.0, %v1662
      %v1665 = vsel %vm925, %v1601, 0
      %v1668 = vsel %vm925, %v1603, 0
      %v1671 = vsel %vm925, %v1605, 0
      %v1674 = vsel %vm925, %v1607, 0
      %v1677 = vsel %vm925, %v1609, 0
      %v1680 = vsel %vm925, %v1611, 0
      %v1683 = vsel %vm925, %v1613, 0
      %v1686 = vsel %vm925, %v1615, 0
      %1688 = vmatprep.subr.mxu0 %v347
      %1689 = vmatpush1.msra.mxu0 %v346
      %1690 = vmatprep.subr.mxu0 %v349
      %1691 = vmatpush1.msra.mxu0 %v348
      %1692 = vmatprep.subr.mxu0 0.0
      %1693 = vmatpush1.msra.mxu0 0.0
      %1694 = vmatprep.subr.mxu0 0.0
      %1695 = vmatpush1.msra.mxu0 0.0
      %1696 = vmatprep.subr.mxu0 0.0
      %1697 = vmatpush1.msra.mxu0 0.0
      %1698 = vmatprep.subr.mxu0 0.0
      %1699 = vmatpush1.msra.mxu0 0.0
      %1700 = vmatprep.subr.mxu0 0.0
      %1701 = vmatpush1.msra.mxu0 0.0
      %1702 = vmatprep.subr.mxu0 0.0
      %1703 = vmatpush1.msra.mxu0 0.0
      %1704 = vmatprep.subr.mxu0 0.0
      %1705 = vmatpush1.msra.mxu0 0.0
      %1706 = vmatprep.subr.mxu0 0.0
      %1707 = vmatpush1.msra.mxu0 0.0
      %1708 = vmatprep.subr.mxu0 0.0
      %1709 = vmatpush1.msra.mxu0 0.0
      %1710 = vmatprep.subr.mxu0 0.0
      %1711 = vmatpush1.msra.mxu0 0.0
      %1712 = vmatprep.subr.mxu0 0.0
      %1713 = vmatpush1.msra.mxu0 0.0
      %1714 = vmatprep.subr.mxu0 0.0
      %1715 = vmatpush1.msra.mxu0 0.0
      %1716 = vmatprep.subr.mxu0 0.0
      %1717 = vmatpush1.msra.mxu0 0.0
      %1718 = vmatprep.subr.mxu0 0.0
      %1719 = vmatpush1.msra.mxu0 0.0
      %1720 = vmatprep.subr.mxu0 0.0
      %1721 = vmatpush1.msra.mxu0 0.0
      %1722 = vmatprep.subr.mxu0 0.0
      %1723 = vmatpush1.msra.mxu0 0.0
      %1724 = vmatprep.subr.mxu0 0.0
      %1725 = vmatpush1.msra.mxu0 0.0
      %1726 = vmatprep.subr.mxu0 0.0
      %1727 = vmatpush1.msra.mxu0 0.0
      %1728 = vmatprep.subr.mxu0 0.0
      %1729 = vmatpush1.msra.mxu0 0.0
      %1730 = vmatprep.subr.mxu0 0.0
      %1731 = vmatpush1.msra.mxu0 0.0
      %1732 = vmatprep.subr.mxu0 0.0
      %1733 = vmatpush1.msra.mxu0 0.0
      %1734 = vmatprep.subr.mxu0 0.0
      %1735 = vmatpush1.msra.mxu0 0.0
      %1736 = vmatprep.subr.mxu0 0.0
      %1737 = vmatpush1.msra.mxu0 0.0
      %1738 = vmatprep.subr.mxu0 0.0
      %1739 = vmatpush1.msra.mxu0 0.0
      %1740 = vmatprep.subr.mxu0 0.0
      %1741 = vmatpush1.msra.mxu0 0.0
      %1742 = vmatprep.subr.mxu0 0.0
      %1743 = vmatpush1.msra.mxu0 0.0
      %1744 = vmatprep.subr.mxu0 0.0
      %1745 = vmatpush1.msra.mxu0 0.0
      %1746 = vmatprep.subr.mxu0 0.0
      %1747 = vmatpush1.msra.mxu0 0.0
      %1748 = vmatprep.subr.mxu0 0.0
      %1749 = vmatpush1.msra.mxu0 0.0
      %1750 = vmatprep.subr.mxu0 0.0
      %1751 = vmatpush1.msra.mxu0 0.0
      %1752 = vmatprep.mubr.f32.mxu0 0.0
      %1753 = vmatmul.mubr.f32.gmra.mrb[0].mxu0 %v1665
      %v1754 = vpop.f32.mrb[0].mxu0
      %v1755 = vadd.f32 0.0, %v1754
      %v1756 = vpop.f32.mrb[0].mxu0
      %v1757 = vadd.f32 0.0, %v1756
      %1758 = vmatprep.mubr.f32.mxu0 0.0
      %1759 = vmatmul.mubr.f32.gmra.mrb[0].mxu0 %v1668
      %v1760 = vpop.f32.mrb[0].mxu0
      %v1761 = vadd.f32 0.0, %v1760
      %v1762 = vpop.f32.mrb[0].mxu0
      %v1763 = vadd.f32 0.0, %v1762
      %1764 = vmatprep.mubr.f32.mxu0 0.0
      %1765 = vmatmul.mubr.f32.gmra.mrb[0].mxu0 %v1671
      %v1766 = vpop.f32.mrb[0].mxu0
      %v1767 = vadd.f32 0.0, %v1766
      %v1768 = vpop.f32.mrb[0].mxu0
      %v1769 = vadd.f32 0.0, %v1768
      %1770 = vmatprep.mubr.f32.mxu0 0.0
      %1771 = vmatmul.mubr.f32.gmra.mrb[0].mxu0 %v1674
      %v1772 = vpop.f32.mrb[0].mxu0
      %v1773 = vadd.f32 0.0, %v1772
      %v1774 = vpop.f32.mrb[0].mxu0
      %v1775 = vadd.f32 0.0, %v1774
      %1776 = vmatprep.mubr.f32.mxu0 0.0
      %1777 = vmatmul.mubr.f32.gmra.mrb[0].mxu0 %v1677
      %v1778 = vpop.f32.mrb[0].mxu0
      %v1779 = vadd.f32 0.0, %v1778
      %v1780 = vpop.f32.mrb[0].mxu0
      %v1781 = vadd.f32 0.0, %v1780
      %1782 = vmatprep.mubr.f32.mxu0 0.0
      %1783 = vmatmul.mubr.f32.gmra.mrb[0].mxu0 %v1680
      %v1784 = vpop.f32.mrb[0].mxu0
      %v1785 = vadd.f32 0.0, %v1784
      %v1786 = vpop.f32.mrb[0].mxu0
      %v1787 = vadd.f32 0.0, %v1786
      %1788 = vmatprep.mubr.f32.mxu0 0.0
      %1789 = vmatmul.mubr.f32.gmra.mrb[0].mxu0 %v1683
      %v1790 = vpop.f32.mrb[0].mxu0
      %v1791 = vadd.f32 0.0, %v1790
      %v1792 = vpop.f32.mrb[0].mxu0
      %v1793 = vadd.f32 0.0, %v1792
      %1794 = vmatprep.mubr.f32.mxu0 0.0
      %1795 = vmatmul.mubr.f32.gmra.mrb[0].mxu0 %v1686
      %v1796 = vpop.f32.mrb[0].mxu0
      %v1797 = vadd.f32 0.0, %v1796
      %v1798 = vpop.f32.mrb[0].mxu0
      %v1799 = vadd.f32 0.0, %v1798
      %1800 = vdwg.mxu0
      %1809 = vrot.lane.b32.xlu0 %v1649, 112
      %v1810 = vpop.permute.xlu0 %1809
      %1811 = vrot.lane.b32.xlu0 %v1651, 112
      %v1812 = vpop.permute.xlu0 %1811
      %1813 = vrot.lane.b32.xlu0 %v1653, 112
      %v1814 = vpop.permute.xlu0 %1813
      %1815 = vrot.lane.b32.xlu0 %v1655, 112
      %v1816 = vpop.permute.xlu0 %1815
      %1817 = vrot.lane.b32.xlu0 %v1657, 112
      %v1818 = vpop.permute.xlu0 %1817
      %1819 = vrot.lane.b32.xlu0 %v1659, 112
      %v1820 = vpop.permute.xlu0 %1819
      %1821 = vrot.lane.b32.xlu0 %v1661, 112
      %v1822 = vpop.permute.xlu0 %1821
      %1823 = vrot.lane.b32.xlu0 %v1663, 112
      %v1824 = vpop.permute.xlu0 %1823
      %v1825 = vsel %vm925, %v1810, 0
      %v1827 = vsel %vm925, %v1812, 0
      %v1829 = vsel %vm925, %v1814, 0
      %v1831 = vsel %vm925, %v1816, 0
      %v1833 = vsel %vm925, %v1818, 0
      %v1835 = vsel %vm925, %v1820, 0
      %v1837 = vsel %vm925, %v1822, 0
      %v1839 = vsel %vm925, %v1824, 0
      %1841 = vmatprep.subr.mxu0 %v351
      %1842 = vmatpush1.msra.mxu0 %v350
      %1843 = vmatprep.subr.mxu0 %v353
      %1844 = vmatpush1.msra.mxu0 %v352
      %1845 = vmatprep.subr.mxu0 0.0
      %1846 = vmatpush1.msra.mxu0 0.0
      %1847 = vmatprep.subr.mxu0 0.0
      %1848 = vmatpush1.msra.mxu0 0.0
      %1849 = vmatprep.subr.mxu0 0.0
      %1850 = vmatpush1.msra.mxu0 0.0
      %1851 = vmatprep.subr.mxu0 0.0
      %1852 = vmatpush1.msra.mxu0 0.0
      %1853 = vmatprep.subr.mxu0 0.0
      %1854 = vmatpush1.msra.mxu0 0.0
      %1855 = vmatprep.subr.mxu0 0.0
      %1856 = vmatpush1.msra.mxu0 0.0
      %1857 = vmatprep.subr.mxu0 0.0
      %1858 = vmatpush1.msra.mxu0 0.0
      %1859 = vmatprep.subr.mxu0 0.0
      %1860 = vmatpush1.msra.mxu0 0.0
      %1861 = vmatprep.subr.mxu0 0.0
      %1862 = vmatpush1.msra.mxu0 0.0
      %1863 = vmatprep.subr.mxu0 0.0
      %1864 = vmatpush1.msra.mxu0 0.0
      %1865 = vmatprep.subr.mxu0 0.0
      %1866 = vmatpush1.msra.mxu0 0.0
      %1867 = vmatprep.subr.mxu0 0.0
      %1868 = vmatpush1.msra.mxu0 0.0
      %1869 = vmatprep.subr.mxu0 0.0
      %1870 = vmatpush1.msra.mxu0 0.0
      %1871 = vmatprep.subr.mxu0 0.0
      %1872 = vmatpush1.msra.mxu0 0.0
      %1873 = vmatprep.subr.mxu0 0.0
      %1874 = vmatpush1.msra.mxu0 0.0
      %1875 = vmatprep.subr.mxu0 0.0
      %1876 = vmatpush1.msra.mxu0 0.0
      %1877 = vmatprep.subr.mxu0 0.0
      %1878 = vmatpush1.msra.mxu0 0.0
      %1879 = vmatprep.subr.mxu0 0.0
      %1880 = vmatpush1.msra.mxu0 0.0
      %1881 = vmatprep.subr.mxu0 0.0
      %1882 = vmatpush1.msra.mxu0 0.0
      %1883 = vmatprep.subr.mxu0 0.0
      %1884 = vmatpush1.msra.mxu0 0.0
      %1885 = vmatprep.subr.mxu0 0.0
      %1886 = vmatpush1.msra.mxu0 0.0
      %1887 = vmatprep.subr.mxu0 0.0
      %1888 = vmatpush1.msra.mxu0 0.0
      %1889 = vmatprep.subr.mxu0 0.0
      %1890 = vmatpush1.msra.mxu0 0.0
      %1891 = vmatprep.subr.mxu0 0.0
      %1892 = vmatpush1.msra.mxu0 0.0
      %1893 = vmatprep.subr.mxu0 0.0
      %1894 = vmatpush1.msra.mxu0 0.0
      %1895 = vmatprep.subr.mxu0 0.0
      %1896 = vmatpush1.msra.mxu0 0.0
      %1897 = vmatprep.subr.mxu0 0.0
      %1898 = vmatpush1.msra.mxu0 0.0
      %1899 = vmatprep.subr.mxu0 0.0
      %1900 = vmatpush1.msra.mxu0 0.0
      %1901 = vmatprep.subr.mxu0 0.0
      %1902 = vmatpush1.msra.mxu0 0.0
      %1903 = vmatprep.subr.mxu0 0.0
      %1904 = vmatpush1.msra.mxu0 0.0
      %1905 = vmatprep.mubr.f32.mxu0 0.0
      %1906 = vmatmul.mubr.f32.gmra.mrb[0].mxu0 %v1825
      %v1907 = vpop.f32.mrb[0].mxu0
      %v1908 = vadd.f32 0.0, %v1907
      %v1909 = vpop.f32.mrb[0].mxu0
      %v1910 = vadd.f32 0.0, %v1909
      %1911 = vmatprep.mubr.f32.mxu0 0.0
      %1912 = vmatmul.mubr.f32.gmra.mrb[0].mxu0 %v1827
      %v1913 = vpop.f32.mrb[0].mxu0
      %v1914 = vadd.f32 0.0, %v1913
      %v1915 = vpop.f32.mrb[0].mxu0
      %v1916 = vadd.f32 0.0, %v1915
      %1917 = vmatprep.mubr.f32.mxu0 0.0
      %1918 = vmatmul.mubr.f32.gmra.mrb[0].mxu0 %v1829
      %v1919 = vpop.f32.mrb[0].mxu0
      %v1920 = vadd.f32 0.0, %v1919
      %v1921 = vpop.f32.mrb[0].mxu0
      %v1922 = vadd.f32 0.0, %v1921
      %1923 = vmatprep.mubr.f32.mxu0 0.0
      %1924 = vmatmul.mubr.f32.gmra.mrb[0].mxu0 %v1831
      %v1925 = vpop.f32.mrb[0].mxu0
      %v1926 = vadd.f32 0.0, %v1925
      %v1927 = vpop.f32.mrb[0].mxu0
      %v1928 = vadd.f32 0.0, %v1927
      %1929 = vmatprep.mubr.f32.mxu0 0.0
      %1930 = vmatmul.mubr.f32.gmra.mrb[0].mxu0 %v1833
      %v1931 = vpop.f32.mrb[0].mxu0
      %v1932 = vadd.f32 0.0, %v1931
      %v1933 = vpop.f32.mrb[0].mxu0
      %v1934 = vadd.f32 0.0, %v1933
      %1935 = vmatprep.mubr.f32.mxu0 0.0
      %1936 = vmatmul.mubr.f32.gmra.mrb[0].mxu0 %v1835
      %v1937 = vpop.f32.mrb[0].mxu0
      %v1938 = vadd.f32 0.0, %v1937
      %v1939 = vpop.f32.mrb[0].mxu0
      %v1940 = vadd.f32 0.0, %v1939
      %1941 = vmatprep.mubr.f32.mxu0 0.0
      %1942 = vmatmul.mubr.f32.gmra.mrb[0].mxu0 %v1837
      %v1943 = vpop.f32.mrb[0].mxu0
      %v1944 = vadd.f32 0.0, %v1943
      %v1945 = vpop.f32.mrb[0].mxu0
      %v1946 = vadd.f32 0.0, %v1945
      %1947 = vmatprep.mubr.f32.mxu0 0.0
      %1948 = vmatmul.mubr.f32.gmra.mrb[0].mxu0 %v1839
      %v1949 = vpop.f32.mrb[0].mxu0
      %v1950 = vadd.f32 0.0, %v1949
      %v1951 = vpop.f32.mrb[0].mxu0
      %v1952 = vadd.f32 0.0, %v1951
      %1953 = vdwg.mxu0
      %v1954 = vmul.f32 %v1265, %v1908
      %v1955 = vmul.f32 %v1266, %v1910
      %v1956 = vmul.f32 %v1267, %v1914
      %v1957 = vmul.f32 %v1268, %v1916
      %v1958 = vmul.f32 %v1269, %v1920
      %v1959 = vmul.f32 %v1270, %v1922
      %v1960 = vmul.f32 %v1271, %v1926
      %v1961 = vmul.f32 %v1272, %v1928
      %v1962 = vmul.f32 %v1273, %v1932
      %v1963 = vmul.f32 %v1274, %v1934
      %v1964 = vmul.f32 %v1275, %v1938
      %v1965 = vmul.f32 %v1276, %v1940
      %v1966 = vmul.f32 %v1277, %v1944
      %v1967 = vmul.f32 %v1278, %v1946
      %v1968 = vmul.f32 %v1279, %v1950
      %v1969 = vmul.f32 %v1280, %v1952
      %v1970 = vmul.f32 %v1954, %v1755
      %v1971 = vmul.f32 %v1955, %v1757
      %v1972 = vmul.f32 %v1956, %v1761
      %v1973 = vmul.f32 %v1957, %v1763
      %v1974 = vmul.f32 %v1958, %v1767
      %v1975 = vmul.f32 %v1959, %v1769
      %v1976 = vmul.f32 %v1960, %v1773
      %v1977 = vmul.f32 %v1961, %v1775
      %v1978 = vmul.f32 %v1962, %v1779
      %v1979 = vmul.f32 %v1963, %v1781
      %v1980 = vmul.f32 %v1964, %v1785
      %v1981 = vmul.f32 %v1965, %v1787
      %v1982 = vmul.f32 %v1966, %v1791
      %v1983 = vmul.f32 %v1967, %v1793
      %v1984 = vmul.f32 %v1968, %v1797
      %v1985 = vmul.f32 %v1969, %v1799
      %s1986 = scalar_lea.vmem %s312, 128
      %1987 = vst [vmem:[%s1986] sm:$0xff] %v1970
      %1988 = vst [vmem:[%s1986 + $0x8] sm:$0xff] %v1971
      %1989 = vst [vmem:[%s1986 + $0x10] sm:$0xff] %v1972
      %1990 = vst [vmem:[%s1986 + $0x18] sm:$0xff] %v1973
      %1991 = vst [vmem:[%s1986 + $0x20] sm:$0xff] %v1974
      %1992 = vst [vmem:[%s1986 + $0x28] sm:$0xff] %v1975
      %1993 = vst [vmem:[%s1986 + $0x30] sm:$0xff] %v1976
      %1994 = vst [vmem:[%s1986 + $0x38] sm:$0xff] %v1977
      %1995 = vst [vmem:[%s1986 + $0x40] sm:$0xff] %v1978
      %1996 = vst [vmem:[%s1986 + $0x48] sm:$0xff] %v1979
      %1997 = vst [vmem:[%s1986 + $0x50] sm:$0xff] %v1980
      %1998 = vst [vmem:[%s1986 + $0x58] sm:$0xff] %v1981
      %1999 = vst [vmem:[%s1986 + $0x60] sm:$0xff] %v1982
      %2000 = vst [vmem:[%s1986 + $0x68] sm:$0xff] %v1983
      %2001 = vst [vmem:[%s1986 + $0x70] sm:$0xff] %v1984
      %2002 = vst [vmem:[%s1986 + $0x78] sm:$0xff] %v1985
      %s2003 = smul.u32 2, %s19
      %p2004 = scmp.lt.s32.totalorder %s2003, 7
      %s2005 = scalar_select %p2004, %s2003, 7
      %s2006 = smul.addr %s2005, 16
      %s2007 = smul.addr %s2006, 8
      %s2008 = scalar_lea.vmem %s8, %s2007
      // Predicated region
      $region53: #{_lambda_.1} parent=51 // pred_check
        %p2009 = pneg %p210
      $region54: #{_lambda_.1} parent=51 // pred_check_branch
        %2011 = sbr.rel (%p2009) target = $region56
      $region55: #{_lambda_.1} parent=51 // pred_region
        %s2012 = smul.u32 2, %s19
      $region56: #{_lambda_.1} parent=51 // pred_fallthru
        _
    $region52: #{_lambda_.1} parent=5 // pred_fallthru
      _
    %p2013 = scmp.le.s32.totalorder 2, %s14
    // Predicated region
    $region57: #{_lambda_.1} parent=5 // pred_check
      %p2014 = pneg %p2013
    $region58: #{_lambda_.1} parent=5 // pred_check_branch
      %2016 = sbr.rel (%p2014) target = $region60
    $region59: #{_lambda_.1} parent=5 // pred_region
      %s2017 = ssub.s32 %s14, 2
      // Predicated region
      $region61: #{_lambda_.1} parent=59 // pred_check
        %p2018 = pneg %p216
      $region62: #{_lambda_.1} parent=59 // pred_check_branch
        %2020 = sbr.rel (%p2018) target = $region64
      $region63: #{_lambda_.1} parent=59 // pred_region
        %s2021 = smul.u32 2, %s20
        %p2022 = scmp.lt.s32.totalorder %s2021, 7
        %s2023 = scalar_select %p2022, %s2021, 7
        %s2024 = smul.addr %s2023, 16
        %s2025 = smul.addr %s2024, 8
        %s2026 = scalar_lea.vmem %s8, %s2025
      $region64: #{_lambda_.1} parent=59 // pred_fallthru
        _
    $region60: #{_lambda_.1} parent=5 // pred_fallthru
      _
  $region6: #{_lambda_.1} parent=0 // loop_footer
    %s18 = sadd.s32 1, %s14
  $region7: #{_lambda_.1} parent=0 // loop_footer_branch
    %13 = sbr.rel target = $region3
  $region8: #{_lambda_.1} parent=0 // loop_exit
    _

</llo_original>
